<compile_context>
chip_gen: v7x
topology: tpu7x:2x2x1
jax: 0.10.0
libtpu: 0.0.40
codegen_flags: <defaults>
</compile_context>

<pallas_src>
import math

import jax
import jax.numpy as jnp
from jax import lax
from jax.experimental import pallas as pl
from jax.experimental.pallas import tpu as pltpu

LEAK = 0.2
BN_EPS = 1e-5
MXU_DTYPE = jnp.bfloat16  # matmul operand / inter-layer activation dtype


def _device_kind():
    try:
        return jax.devices()[0].device_kind.lower()
    except Exception:
        return ""


_KIND = _device_kind()
_IS_V7 = ("v7" in _KIND) or ("tpu7" in _KIND)
# v7x has 64 MiB physical VMEM per core; v5e/v6e have 128 MiB.
_VMEM_CAP = (48 << 20) if _IS_V7 else (96 << 20)
# Layer-1 lane-tile cap: keep >= 2 parallel grid steps on v7x (megacore),
# one big tile on v5e/v6e (single TC, fewer per-step overheads).
_TM_CAP_L1 = 1024 if _IS_V7 else 2048


# ------------------------------ Pallas kernels ------------------------------

def conv_lrelu_kernel(wt_ref, xt_ref, at_ref):
    """A^T tile = LeakyReLU(W^T @ X^T).  Output (Cout, tm) is lane-dense."""
    y = jnp.dot(wt_ref[...], xt_ref[...], preferred_element_type=jnp.float32)
    at_ref[...] = jnp.maximum(y, LEAK * y).astype(at_ref.dtype)


def conv_bn_lrelu_kernel(wt_ref, xt_ref, g_ref, b_ref, at_ref):
    """Fused conv + BatchNorm(batch stats, stable two-pass var) + LeakyReLU.
    Whole M lives in one tile, so stats are exact and only bf16 A^T is stored."""
    y = jnp.dot(wt_ref[...], xt_ref[...], preferred_element_type=jnp.float32)
    m = y.shape[1]
    mean = jnp.sum(y, axis=1, keepdims=True) * (1.0 / m)
    d = y - mean
    var = jnp.sum(d * d, axis=1, keepdims=True) * (1.0 / m)
    z = d * (g_ref[...] * lax.rsqrt(var + BN_EPS)) + b_ref[...]
    at_ref[...] = jnp.maximum(z, LEAK * z).astype(at_ref.dtype)


def conv_bn_lrelu_head_kernel(wt_ref, xt_ref, g_ref, b_ref, w5_ref, sel_ref,
                              o_ref):
    """Fused tail: layer-4 conv + BN + LeakyReLU, then the final 4x4/valid conv
    as a VPU multiply + sublane reduce + tiny selector dot, then sigmoid."""
    y = jnp.dot(wt_ref[...], xt_ref[...], preferred_element_type=jnp.float32)
    m = y.shape[1]
    mean = jnp.sum(y, axis=1, keepdims=True) * (1.0 / m)
    d = y - mean
    var = jnp.sum(d * d, axis=1, keepdims=True) * (1.0 / m)
    z = d * (g_ref[...] * lax.rsqrt(var + BN_EPS)) + b_ref[...]
    a = jnp.maximum(z, LEAK * z)                           # (Cout, N*16) f32
    p = jnp.sum(a * w5_ref[...], axis=0, keepdims=True)    # (1, N*16)
    logit = jnp.dot(p, sel_ref[...], preferred_element_type=jnp.float32)
    o_ref[...] = jax.nn.sigmoid(logit)                     # (1, N)


# Fallback path (only used when the fused single-tile kernel would not fit).
def conv_stats_kernel(wt_ref, xt_ref, yt_ref, s1_ref, s2_ref):
    @pl.when(pl.program_id(0) == 0)
    def _init():
        s1_ref[...] = jnp.zeros_like(s1_ref)
        s2_ref[...] = jnp.zeros_like(s2_ref)

    y = jnp.dot(wt_ref[...], xt_ref[...], preferred_element_type=jnp.float32)
    yt_ref[...] = y.astype(yt_ref.dtype)           # bf16 intermediate (halved HBM)
    s1_ref[...] += jnp.sum(y, axis=1, keepdims=True)
    s2_ref[...] += jnp.sum(y * y, axis=1, keepdims=True)


def bn_lrelu_kernel(yt_ref, sc_ref, sh_ref, at_ref):
    z = yt_ref[...].astype(jnp.float32) * sc_ref[...] + sh_ref[...]
    at_ref[...] = jnp.maximum(z, LEAK * z).astype(at_ref.dtype)


# ------------------------------ helpers (plain JAX) --------------------------

def _round_up(v, m):
    return ((v + m - 1) // m) * m


def _nbytes(shape, dtype):
    return int(math.prod(shape)) * jnp.dtype(dtype).itemsize


def _full_spec(shape):
    return pl.BlockSpec(shape, lambda: (0,) * len(shape))


def _compiler_params(block_bytes, semantics=None):
    # Double-buffered blocks plus headroom, capped by a per-generation budget.
    vmem = int(min(_VMEM_CAP, max(16 << 20, 4 * block_bytes)))
    return pltpu.CompilerParams(dimension_semantics=semantics,
                                vmem_limit_bytes=vmem)


def _pick_tm(m, cap):
    """Lane tile along M: one tile if it fits the cap, else the largest
    multiple of 128 dividing M (padding M up to a multiple of 128 if needed)
    so every block stays lane-dense and the grid stays pipelined."""
    if m <= cap:
        return m, m
    cap = max(128, (cap // 128) * 128)
    for t in range(cap, 0, -128):
        if m % t == 0:
            return t, m
    m_pad = _round_up(m, 128)
    for t in range(cap, 0, -128):
        if m_pad % t == 0:
            return t, m_pad
    return 128, m_pad


def _fused_fits(cout, k, m):
    """Can W^T, X^T, A^T and the f32 working set share one VMEM tile?"""
    need = 2 * (cout * k * 2 + k * m * 2 + cout * m * 2 + cout * m * 4)
    return need < (24 << 20)


def _im2col_T(x_cnhw, ksize, stride, pad, k_pad=None):
    """Channel-major im2col: (C, N, H, W) -> X^T (KH*KW*C, N*Ho*Wo) in bf16.
    K order (kh, kw, c), M order (n, i, j).  Stays in the transposed layout,
    so there is no NHWC round trip between layers."""
    # TODO(synk): move this tap gather into the conv kernels (K-phase
    # decomposition with in-kernel accumulation) to avoid materializing the
    # 16x K-expanded matrix in HBM; kept wrapper-side for lowering safety.
    c, n, h, w = x_cnhw.shape
    xp = jnp.pad(x_cnhw, ((0, 0), (0, 0), (pad, pad), (pad, pad)))
    ho = (h + 2 * pad - ksize) // stride + 1
    wo = (w + 2 * pad - ksize) // stride + 1
    taps = []
    for kh in range(ksize):
        for kw in range(ksize):
            taps.append(xp[:, :, kh:kh + stride * ho:stride,
                           kw:kw + stride * wo:stride])
    p = jnp.stack(taps, axis=0)                     # (K*K, C, N, Ho, Wo)
    xt = p.reshape(ksize * ksize * c, n * ho * wo)
    if k_pad is not None and k_pad > xt.shape[0]:
        xt = jnp.pad(xt, ((0, k_pad - xt.shape[0]), (0, 0)))
    return xt.astype(MXU_DTYPE), (ho, wo)


def _weight_T(w_oihw, k_pad=None):
    """(Cout,Cin,KH,KW) -> W^T (Cout, KH*KW*Cin), same K order as _im2col_T."""
    cout, cin, kh, kw = w_oihw.shape
    wt = jnp.transpose(w_oihw, (0, 2, 3, 1)).reshape(cout, kh * kw * cin)
    if k_pad is not None and k_pad > wt.shape[1]:
        wt = jnp.pad(wt, ((0, 0), (0, k_pad - wt.shape[1])))
    return wt.astype(MXU_DTYPE)


# ------------------------------ pallas_call wrappers --------------------------

def _conv_lrelu(wt, xt, out_dtype=MXU_DTYPE):
    """Layer 1: conv + LeakyReLU, M-tiled (parallel grid)."""
    cout, k = wt.shape
    _, m = xt.shape
    tm, m_pad = _pick_tm(m, _TM_CAP_L1)
    if m_pad != m:
        xt = jnp.pad(xt, ((0, 0), (0, m_pad - m)))
    grid = (m_pad // tm,)
    block_bytes = (_nbytes((cout, k), wt.dtype) + _nbytes((k, tm), xt.dtype)
                   + _nbytes((cout, tm), out_dtype))
    out = pl.pallas_call(
        conv_lrelu_kernel,
        grid=grid,
        in_specs=[pl.BlockSpec((cout, k), lambda i: (0, 0)),
                  pl.BlockSpec((k, tm), lambda i: (0, i))],
        out_specs=pl.BlockSpec((cout, tm), lambda i: (0, i)),
        out_shape=jax.ShapeDtypeStruct((cout, m_pad), out_dtype),
        compiler_params=_compiler_params(block_bytes, ("parallel",)),
    )(wt, xt)
    return out[:, :m] if m_pad != m else out


def _conv_bn_lrelu_tiled(wt, xt, gamma, beta, out_dtype=MXU_DTYPE):
    """Fallback when the fused single-tile kernel would not fit VMEM: tiled
    conv + stats pass (bf16 y), then a tiled affine + LeakyReLU pass."""
    cout, k = wt.shape
    _, m = xt.shape
    raw = (8 << 20) // (2 * (k + 3 * cout))
    tm_cap = max(128, min(2048, (raw // 128) * 128))
    tm, m_pad = _pick_tm(m, tm_cap)
    if m_pad != m:
        xt = jnp.pad(xt, ((0, 0), (0, m_pad - m)))  # zero cols: no effect on sums
    grid = (m_pad // tm,)
    block_bytes = (_nbytes((cout, k), MXU_DTYPE) + _nbytes((k, tm), MXU_DTYPE)
                   + _nbytes((cout, tm), MXU_DTYPE)
                   + 2 * _nbytes((cout, 1), jnp.float32))
    yt, s1, s2 = pl.pallas_call(
        conv_stats_kernel,
        grid=grid,
        in_specs=[pl.BlockSpec((cout, k), lambda i: (0, 0)),
                  pl.BlockSpec((k, tm), lambda i: (0, i))],
        out_specs=[pl.BlockSpec((cout, tm), lambda i: (0, i)),
                   pl.BlockSpec((cout, 1), lambda i: (0, 0)),
                   pl.BlockSpec((cout, 1), lambda i: (0, 0))],
        out_shape=[jax.ShapeDtypeStruct((cout, m_pad), MXU_DTYPE),
                   jax.ShapeDtypeStruct((cout, 1), jnp.float32),
                   jax.ShapeDtypeStruct((cout, 1), jnp.float32)],
        compiler_params=_compiler_params(block_bytes, ("arbitrary",)),
    )(wt, xt)
    mean = s1 / m
    # TODO(synk): E[y^2]-E[y]^2 cancels when |mean| >> std; the fused path
    # (used at these sizes) computes mean((y-mean)^2) instead.
    var = jnp.maximum(s2 / m - mean * mean, 0.0)
    scale = gamma.reshape(-1, 1).astype(jnp.float32) * lax.rsqrt(var + BN_EPS)
    shift = beta.reshape(-1, 1).astype(jnp.float32) - mean * scale
    block_bytes2 = (2 * _nbytes((cout, tm), MXU_DTYPE)
                    + 2 * _nbytes((cout, 1), jnp.float32))
    at = pl.pallas_call(
        bn_lrelu_kernel,
        grid=grid,
        in_specs=[pl.BlockSpec((cout, tm), lambda i: (0, i)),
                  pl.BlockSpec((cout, 1), lambda i: (0, 0)),
                  pl.BlockSpec((cout, 1), lambda i: (0, 0))],
        out_specs=pl.BlockSpec((cout, tm), lambda i: (0, i)),
        out_shape=jax.ShapeDtypeStruct((cout, m_pad), out_dtype),
        compiler_params=_compiler_params(block_bytes2, ("parallel",)),
    )(yt, scale, shift)
    return at[:, :m] if m_pad != m else at


def _conv_bn_lrelu(wt, xt, gamma, beta, out_dtype=MXU_DTYPE):
    """Layers 2-3: fully fused conv + BN(batch stats) + LeakyReLU."""
    cout, k = wt.shape
    _, m = xt.shape
    if not _fused_fits(cout, k, m):
        return _conv_bn_lrelu_tiled(wt, xt, gamma, beta, out_dtype)
    g = gamma.reshape(-1, 1).astype(jnp.float32)
    b = beta.reshape(-1, 1).astype(jnp.float32)
    block_bytes = (_nbytes((cout, k), wt.dtype) + _nbytes((k, m), xt.dtype)
                   + _nbytes((cout, m), out_dtype)
                   + _nbytes((cout, m), jnp.float32))
    return pl.pallas_call(
        conv_bn_lrelu_kernel,
        in_specs=[_full_spec((cout, k)), _full_spec((k, m)),
                  _full_spec((cout, 1)), _full_spec((cout, 1))],
        out_specs=_full_spec((cout, m)),
        out_shape=jax.ShapeDtypeStruct((cout, m), out_dtype),
        compiler_params=_compiler_params(block_bytes),
    )(wt, xt, g, b)


def _conv_bn_lrelu_head(wt, xt, gamma, beta, w5t, sel):
    """Layer 4 + head: conv + BN + LeakyReLU + final 4x4 conv + sigmoid."""
    cout, k = wt.shape
    _, m = xt.shape
    n = sel.shape[1]
    # TODO(synk): no tiled fallback for the fused head; at huge batch sizes
    # use _conv_bn_lrelu_tiled for layer 4 plus a standalone head kernel.
    g = gamma.reshape(-1, 1).astype(jnp.float32)
    b = beta.reshape(-1, 1).astype(jnp.float32)
    block_bytes = (_nbytes((cout, k), wt.dtype) + _nbytes((k, m), xt.dtype)
                   + 2 * _nbytes((cout, m), jnp.float32)
                   + _nbytes((m, n), jnp.float32))
    return pl.pallas_call(
        conv_bn_lrelu_head_kernel,
        in_specs=[_full_spec((cout, k)), _full_spec((k, m)),
                  _full_spec((cout, 1)), _full_spec((cout, 1)),
                  _full_spec((cout, m)), _full_spec((m, n))],
        out_specs=_full_spec((1, n)),
        out_shape=jax.ShapeDtypeStruct((1, n), jnp.float32),
        compiler_params=_compiler_params(block_bytes),
    )(wt, xt, g, b, w5t, sel)


# ------------------------------ forward pass ---------------------------------

def init_discriminator_params(key, input_size, hidden_size):
    """Deterministic synthetic parameters (same shapes as the PyTorch module)."""
    h = hidden_size
    shapes = [
        (h, input_size, 4, 4),
        (2 * h, h, 4, 4),
        (4 * h, 2 * h, 4, 4),
        (8 * h, 4 * h, 4, 4),
        (1, 8 * h, 4, 4),
    ]
    keys = jax.random.split(key, len(shapes))
    params = {"w": [0.05 * jax.random.normal(k, s, jnp.float32)
                    for k, s in zip(keys, shapes)]}
    # BatchNorm2d defaults: gamma=1, beta=0 (running stats unused in train mode).
    params["gamma"] = [jnp.ones((2 * h,), jnp.float32),
                       jnp.ones((4 * h,), jnp.float32),
                       jnp.ones((8 * h,), jnp.float32)]
    params["beta"] = [jnp.zeros((2 * h,), jnp.float32),
                      jnp.zeros((4 * h,), jnp.float32),
                      jnp.zeros((8 * h,), jnp.float32)]
    return params


def discriminator_forward(params, x_nchw):
    """Forward pass. Input is NCHW (PyTorch convention); returns (N, 1)."""
    w, gam, bet = params["w"], params["gamma"], params["beta"]
    n = x_nchw.shape[0]
    # Channel-major transposed layout (C, N, H, W); activations stay in the
    # transposed (C, N*H*W) layout end-to-end (no NHWC round trips).
    x = jnp.transpose(x_nchw, (1, 0, 2, 3)).astype(jnp.float32)
    c, _, h, wd = x.shape

    # ---- layer 1: conv(4,2,1) + LeakyReLU (no BN), M-tiled ----
    k_pad = _round_up(16 * c, 64)                    # ragged K (48) -> 64
    xt, (h, wd) = _im2col_T(x, 4, 2, 1, k_pad=k_pad)
    a_t = _conv_lrelu(_weight_T(w[0], k_pad=k_pad), xt)      # (H, N*32*32) bf16
    c = a_t.shape[0]

    # ---- layers 2..3: fused conv -> BN(batch stats) -> LeakyReLU ----
    for li in (1, 2):
        xt, (h, wd) = _im2col_T(a_t.reshape(c, n, h, wd), 4, 2, 1)
        a_t = _conv_bn_lrelu(_weight_T(w[li]), xt, gam[li - 1], bet[li - 1])
        c = a_t.shape[0]

    # ---- layer 4 + head: conv -> BN -> LeakyReLU -> conv(4,1,0) -> sigmoid ----
    xt, (h, wd) = _im2col_T(a_t.reshape(c, n, h, wd), 4, 2, 1)
    cout4 = w[3].shape[0]
    s4 = h * wd                                              # == 16
    w5r = w[4][0].reshape(cout4, s4).astype(jnp.float32)     # (8H, 16)
    w5t = jnp.tile(w5r, (1, n))                              # (8H, N*16)
    sel = jnp.repeat(jnp.eye(n, dtype=jnp.float32), s4, axis=0)  # (N*16, N)
    out = _conv_bn_lrelu_head(_weight_T(w[3]), xt, gam[2], bet[2], w5t, sel)
    return jnp.transpose(out)                                # (N, 1)


# ------------------------------ pure-JAX reference ---------------------------

def _reference_forward(params, x_nchw):
    w, gam, bet = params["w"], params["gamma"], params["beta"]

    def conv(x, wi, stride, pad):
        return lax.conv_general_dilated(
            x, wi, window_strides=(stride, stride),
            padding=((pad, pad), (pad, pad)),
            dimension_numbers=("NCHW", "OIHW", "NCHW"))

    def lrelu(x):
        return jnp.where(x > 0, x, LEAK * x)

    def bn(x, g, b):
        mean = jnp.mean(x, axis=(0, 2, 3), keepdims=True)
        var = jnp.mean((x - mean) ** 2, axis=(0, 2, 3), keepdims=True)
        return ((x - mean) * lax.rsqrt(var + BN_EPS)
                * g[None, :, None, None] + b[None, :, None, None])

    x = x_nchw.astype(jnp.float32)
    x = lrelu(conv(x, w[0], 2, 1))
    x = lrelu(bn(conv(x, w[1], 2, 1), gam[0], bet[0]))
    x = lrelu(bn(conv(x, w[2], 2, 1), gam[1], bet[1]))
    x = lrelu(bn(conv(x, w[3], 2, 1), gam[2], bet[2]))
    x = jax.nn.sigmoid(conv(x, w[4], 1, 0))
    return x.reshape(x.shape[0], -1)


# ----------------------------------- main ------------------------------------

if __name__ == "__main__":
    # The final 4x4 / stride-1 / no-pad conv implies a 64x64 input.
    batch, input_size, hidden_size, spatial = 2, 3, 8, 64

    key = jax.random.PRNGKey(0)
    k_x, k_p = jax.random.split(key)
    x = jax.random.normal(k_x, (batch, input_size, spatial, spatial), jnp.float32)
    params = init_discriminator_params(k_p, input_size, hidden_size)

    out = jax.jit(discriminator_forward)(params, x)
    out = jax.block_until_ready(out)

    assert out.shape == (batch, 1), out.shape
    assert bool(jnp.all(jnp.isfinite(out)))
    assert bool(jnp.all((out >= 0.0) & (out <= 1.0)))  # sigmoid range

    ref = _reference_forward(params, x)
    err = float(jnp.max(jnp.abs(out - ref)))
    assert err < 0.1, f"mismatch vs f32 reference: {err}"  # bf16 MXU operands

    print("KERNEL_OK")
</pallas_src>

<mosaic_0001>
module attributes {stable_mosaic.version = 11 : i64} {
  func.func @conv_lrelu_kernel(%arg0: i32, %arg1: memref<8x64xbf16, #tpu.memory_space<vmem>>, %arg2: memref<64x2048xbf16, #tpu.memory_space<vmem>>, %arg3: memref<8x2048xbf16, #tpu.memory_space<vmem>>) attributes {dimension_semantics = [#tpu.dimension_semantics<parallel>], iteration_bounds = array<i64: 1>, scalar_prefetch = 0 : i64, scratch_operands = 0 : i64, tpu.core_type = #tpu.core_type<tc>, window_params = [{pipeline_mode = #tpu.pipeline_mode<synchronous>, transform_indices = @transform_0, window_bounds = array<i64: 8, 64>}, {transform_indices = @transform_1, window_bounds = array<i64: 64, 2048>}, {transform_indices = @transform_2, window_bounds = array<i64: 8, 2048>}]} {
    %c0 = arith.constant 0 : index
    %c0_0 = arith.constant 0 : index
    %0 = vector.load %arg1[%c0, %c0_0] : memref<8x64xbf16, #tpu.memory_space<vmem>>, vector<8x64xbf16>
    %c0_1 = arith.constant 0 : index
    %c0_2 = arith.constant 0 : index
    %1 = vector.load %arg2[%c0_1, %c0_2] : memref<64x2048xbf16, #tpu.memory_space<vmem>>, vector<64x2048xbf16>
    %cst = arith.constant dense<0.000000e+00> : vector<8x2048xf32>
    %2 = tpu.matmul %0, %1, %cst {dimension_numbers = #tpu.dot_dimension_numbers<[1], [0], [0], [1], [0, 0, 1, 1], [], []>} : vector<8x64xbf16>, vector<64x2048xbf16>, vector<8x2048xf32> -> vector<8x2048xf32>
    %cst_3 = arith.constant 2.000000e-01 : f32
    %3 = vector.broadcast %cst_3 : f32 to vector<8x2048xf32>
    %4 = arith.mulf %3, %2 : vector<8x2048xf32>
    %5 = arith.maximumf %2, %4 : vector<8x2048xf32>
    %6 = arith.truncf %5 : vector<8x2048xf32> to vector<8x2048xbf16>
    %c0_4 = arith.constant 0 : index
    %c0_5 = arith.constant 0 : index
    %7 = vector.load %arg3[%c0_4, %c0_5] : memref<8x2048xbf16, #tpu.memory_space<vmem>>, vector<8x2048xbf16>
    tpu.vector_store %arg3[%c0_4, %c0_5], %6 {strides = array<i32>} : memref<8x2048xbf16, #tpu.memory_space<vmem>>, vector<8x2048xbf16>,
    return
  }
  func.func @transform_0(%arg0: i32) -> (i32, i32) {
    %c0_i32 = arith.constant 0 : i32
    %c0_i32_0 = arith.constant 0 : i32
    %c0_i32_1 = arith.constant 0 : i32
    return %c0_i32, %c0_i32_0 : i32, i32
  }
  func.func @transform_1(%arg0: i32) -> (i32, i32) {
    %c0_i32 = arith.constant 0 : i32
    %c0_i32_0 = arith.constant 0 : i32
    return %c0_i32, %arg0 : i32, i32
  }
  func.func @transform_2(%arg0: i32) -> (i32, i32) {
    %c0_i32 = arith.constant 0 : i32
    %c0_i32_0 = arith.constant 0 : i32
    return %c0_i32, %arg0 : i32, i32
  }
}

module attributes {stable_mosaic.version = 11 : i64} {
  func.func @conv_bn_lrelu_kernel(%arg0: memref<16x128xbf16, #tpu.memory_space<vmem>>, %arg1: memref<128x512xbf16, #tpu.memory_space<vmem>>, %arg2: memref<16x1xf32, #tpu.memory_space<vmem>>, %arg3: memref<16x1xf32, #tpu.memory_space<vmem>>, %arg4: memref<16x512xbf16, #tpu.memory_space<vmem>>) attributes {dimension_semantics = [], scalar_prefetch = 0 : i64, scratch_operands = 0 : i64, tpu.core_type = #tpu.core_type<tc>} {
    %c0 = arith.constant 0 : index
    %c0_0 = arith.constant 0 : index
    %0 = vector.load %arg0[%c0, %c0_0] : memref<16x128xbf16, #tpu.memory_space<vmem>>, vector<16x128xbf16>
    %c0_1 = arith.constant 0 : index
    %c0_2 = arith.constant 0 : index
    %1 = vector.load %arg1[%c0_1, %c0_2] : memref<128x512xbf16, #tpu.memory_space<vmem>>, vector<128x512xbf16>
    %cst = arith.constant dense<0.000000e+00> : vector<16x512xf32>
    %2 = tpu.matmul %0, %1, %cst {dimension_numbers = #tpu.dot_dimension_numbers<[1], [0], [0], [1], [0, 0, 1, 1], [], []>} : vector<16x128xbf16>, vector<128x512xbf16>, vector<16x512xf32> -> vector<16x512xf32>
    %cst_3 = arith.constant dense<0.000000e+00> : vector<16xf32>
    %3 = vector.multi_reduction <add>, %2, %cst_3 [1] : vector<16x512xf32> to vector<16xf32>
    %4 = vector.shape_cast %3 : vector<16xf32> to vector<16x1xf32>
    %cst_4 = arith.constant 0.001953125 : f32
    %5 = vector.broadcast %cst_4 : f32 to vector<16x1xf32>
    %6 = arith.mulf %4, %5 : vector<16x1xf32>
    %7 = vector.broadcast %6 : vector<16x1xf32> to vector<16x512xf32>
    %8 = arith.subf %2, %7 : vector<16x512xf32>
    %9 = arith.mulf %8, %8 : vector<16x512xf32>
    %cst_5 = arith.constant dense<0.000000e+00> : vector<16xf32>
    %10 = vector.multi_reduction <add>, %9, %cst_5 [1] : vector<16x512xf32> to vector<16xf32>
    %11 = vector.shape_cast %10 : vector<16xf32> to vector<16x1xf32>
    %cst_6 = arith.constant 0.001953125 : f32
    %12 = vector.broadcast %cst_6 : f32 to vector<16x1xf32>
    %13 = arith.mulf %11, %12 : vector<16x1xf32>
    %c0_7 = arith.constant 0 : index
    %c0_8 = arith.constant 0 : index
    %14 = vector.load %arg2[%c0_7, %c0_8] : memref<16x1xf32, #tpu.memory_space<vmem>>, vector<16x1xf32>
    %cst_9 = arith.constant 9.99999974E-6 : f32
    %15 = vector.broadcast %cst_9 : f32 to vector<16x1xf32>
    %16 = arith.addf %13, %15 : vector<16x1xf32>
    %17 = math.rsqrt %16 : vector<16x1xf32>
    %18 = arith.mulf %14, %17 : vector<16x1xf32>
    %19 = vector.broadcast %18 : vector<16x1xf32> to vector<16x512xf32>
    %20 = arith.mulf %8, %19 : vector<16x512xf32>
    %c0_10 = arith.constant 0 : index
    %c0_11 = arith.constant 0 : index
    %21 = vector.load %arg3[%c0_10, %c0_11] : memref<16x1xf32, #tpu.memory_space<vmem>>, vector<16x1xf32>
    %22 = vector.broadcast %21 : vector<16x1xf32> to vector<16x512xf32>
    %23 = arith.addf %20, %22 : vector<16x512xf32>
    %cst_12 = arith.constant 2.000000e-01 : f32
    %24 = vector.broadcast %cst_12 : f32 to vector<16x512xf32>
    %25 = arith.mulf %24, %23 : vector<16x512xf32>
    %26 = arith.maximumf %23, %25 : vector<16x512xf32>
    %27 = arith.truncf %26 : vector<16x512xf32> to vector<16x512xbf16>
    %c0_13 = arith.constant 0 : index
    %c0_14 = arith.constant 0 : index
    %28 = vector.load %arg4[%c0_13, %c0_14] : memref<16x512xbf16, #tpu.memory_space<vmem>>, vector<16x512xbf16>
    tpu.vector_store %arg4[%c0_13, %c0_14], %27 {strides = array<i32>} : memref<16x512xbf16, #tpu.memory_space<vmem>>, vector<16x512xbf16>,
    return
  }
}

module attributes {stable_mosaic.version = 11 : i64} {
  func.func @conv_bn_lrelu_kernel(%arg0: memref<32x256xbf16, #tpu.memory_space<vmem>>, %arg1: memref<256x128xbf16, #tpu.memory_space<vmem>>, %arg2: memref<32x1xf32, #tpu.memory_space<vmem>>, %arg3: memref<32x1xf32, #tpu.memory_space<vmem>>, %arg4: memref<32x128xbf16, #tpu.memory_space<vmem>>) attributes {dimension_semantics = [], scalar_prefetch = 0 : i64, scratch_operands = 0 : i64, tpu.core_type = #tpu.core_type<tc>} {
    %c0 = arith.constant 0 : index
    %c0_0 = arith.constant 0 : index
    %0 = vector.load %arg0[%c0, %c0_0] : memref<32x256xbf16, #tpu.memory_space<vmem>>, vector<32x256xbf16>
    %c0_1 = arith.constant 0 : index
    %c0_2 = arith.constant 0 : index
    %1 = vector.load %arg1[%c0_1, %c0_2] : memref<256x128xbf16, #tpu.memory_space<vmem>>, vector<256x128xbf16>
    %cst = arith.constant dense<0.000000e+00> : vector<32x128xf32>
    %2 = tpu.matmul %0, %1, %cst {dimension_numbers = #tpu.dot_dimension_numbers<[1], [0], [0], [1], [0, 0, 1, 1], [], []>} : vector<32x256xbf16>, vector<256x128xbf16>, vector<32x128xf32> -> vector<32x128xf32>
    %cst_3 = arith.constant dense<0.000000e+00> : vector<32xf32>
    %3 = vector.multi_reduction <add>, %2, %cst_3 [1] : vector<32x128xf32> to vector<32xf32>
    %4 = vector.shape_cast %3 : vector<32xf32> to vector<32x1xf32>
    %cst_4 = arith.constant 7.812500e-03 : f32
    %5 = vector.broadcast %cst_4 : f32 to vector<32x1xf32>
    %6 = arith.mulf %4, %5 : vector<32x1xf32>
    %7 = vector.broadcast %6 : vector<32x1xf32> to vector<32x128xf32>
    %8 = arith.subf %2, %7 : vector<32x128xf32>
    %9 = arith.mulf %8, %8 : vector<32x128xf32>
    %cst_5 = arith.constant dense<0.000000e+00> : vector<32xf32>
    %10 = vector.multi_reduction <add>, %9, %cst_5 [1] : vector<32x128xf32> to vector<32xf32>
    %11 = vector.shape_cast %10 : vector<32xf32> to vector<32x1xf32>
    %cst_6 = arith.constant 7.812500e-03 : f32
    %12 = vector.broadcast %cst_6 : f32 to vector<32x1xf32>
    %13 = arith.mulf %11, %12 : vector<32x1xf32>
    %c0_7 = arith.constant 0 : index
    %c0_8 = arith.constant 0 : index
    %14 = vector.load %arg2[%c0_7, %c0_8] : memref<32x1xf32, #tpu.memory_space<vmem>>, vector<32x1xf32>
    %cst_9 = arith.constant 9.99999974E-6 : f32
    %15 = vector.broadcast %cst_9 : f32 to vector<32x1xf32>
    %16 = arith.addf %13, %15 : vector<32x1xf32>
    %17 = math.rsqrt %16 : vector<32x1xf32>
    %18 = arith.mulf %14, %17 : vector<32x1xf32>
    %19 = vector.broadcast %18 : vector<32x1xf32> to vector<32x128xf32>
    %20 = arith.mulf %8, %19 : vector<32x128xf32>
    %c0_10 = arith.constant 0 : index
    %c0_11 = arith.constant 0 : index
    %21 = vector.load %arg3[%c0_10, %c0_11] : memref<32x1xf32, #tpu.memory_space<vmem>>, vector<32x1xf32>
    %22 = vector.broadcast %21 : vector<32x1xf32> to vector<32x128xf32>
    %23 = arith.addf %20, %22 : vector<32x128xf32>
    %cst_12 = arith.constant 2.000000e-01 : f32
    %24 = vector.broadcast %cst_12 : f32 to vector<32x128xf32>
    %25 = arith.mulf %24, %23 : vector<32x128xf32>
    %26 = arith.maximumf %23, %25 : vector<32x128xf32>
    %27 = arith.truncf %26 : vector<32x128xf32> to vector<32x128xbf16>
    %c0_13 = arith.constant 0 : index
    %c0_14 = arith.constant 0 : index
    %28 = vector.load %arg4[%c0_13, %c0_14] : memref<32x128xbf16, #tpu.memory_space<vmem>>, vector<32x128xbf16>
    tpu.vector_store %arg4[%c0_13, %c0_14], %27 {strides = array<i32>} : memref<32x128xbf16, #tpu.memory_space<vmem>>, vector<32x128xbf16>,
    return
  }
}

module attributes {stable_mosaic.version = 11 : i64} {
  func.func @conv_bn_lrelu_head_kernel(%arg0: memref<64x512xbf16, #tpu.memory_space<vmem>>, %arg1: memref<512x32xbf16, #tpu.memory_space<vmem>>, %arg2: memref<64x1xf32, #tpu.memory_space<vmem>>, %arg3: memref<64x1xf32, #tpu.memory_space<vmem>>, %arg4: memref<64x32xf32, #tpu.memory_space<vmem>>, %arg5: memref<32x2xf32, #tpu.memory_space<vmem>>, %arg6: memref<1x2xf32, #tpu.memory_space<vmem>>) attributes {dimension_semantics = [], scalar_prefetch = 0 : i64, scratch_operands = 0 : i64, tpu.core_type = #tpu.core_type<tc>} {
    %c0 = arith.constant 0 : index
    %c0_0 = arith.constant 0 : index
    %0 = vector.load %arg0[%c0, %c0_0] : memref<64x512xbf16, #tpu.memory_space<vmem>>, vector<64x512xbf16>
    %c0_1 = arith.constant 0 : index
    %c0_2 = arith.constant 0 : index
    %1 = vector.load %arg1[%c0_1, %c0_2] : memref<512x32xbf16, #tpu.memory_space<vmem>>, vector<512x32xbf16>
    %cst = arith.constant dense<0.000000e+00> : vector<64x32xf32>
    %2 = tpu.matmul %0, %1, %cst {dimension_numbers = #tpu.dot_dimension_numbers<[1], [0], [0], [1], [0, 0, 1, 1], [], []>} : vector<64x512xbf16>, vector<512x32xbf16>, vector<64x32xf32> -> vector<64x32xf32>
    %cst_3 = arith.constant dense<0.000000e+00> : vector<64xf32>
    %3 = vector.multi_reduction <add>, %2, %cst_3 [1] : vector<64x32xf32> to vector<64xf32>
    %4 = vector.shape_cast %3 : vector<64xf32> to vector<64x1xf32>
    %cst_4 = arith.constant 3.125000e-02 : f32
    %5 = vector.broadcast %cst_4 : f32 to vector<64x1xf32>
    %6 = arith.mulf %4, %5 : vector<64x1xf32>
    %7 = vector.broadcast %6 : vector<64x1xf32> to vector<64x32xf32>
    %8 = arith.subf %2, %7 : vector<64x32xf32>
    %9 = arith.mulf %8, %8 : vector<64x32xf32>
    %cst_5 = arith.constant dense<0.000000e+00> : vector<64xf32>
    %10 = vector.multi_reduction <add>, %9, %cst_5 [1] : vector<64x32xf32> to vector<64xf32>
    %11 = vector.shape_cast %10 : vector<64xf32> to vector<64x1xf32>
    %cst_6 = arith.constant 3.125000e-02 : f32
    %12 = vector.broadcast %cst_6 : f32 to vector<64x1xf32>
    %13 = arith.mulf %11, %12 : vector<64x1xf32>
    %c0_7 = arith.constant 0 : index
    %c0_8 = arith.constant 0 : index
    %14 = vector.load %arg2[%c0_7, %c0_8] : memref<64x1xf32, #tpu.memory_space<vmem>>, vector<64x1xf32>
    %cst_9 = arith.constant 9.99999974E-6 : f32
    %15 = vector.broadcast %cst_9 : f32 to vector<64x1xf32>
    %16 = arith.addf %13, %15 : vector<64x1xf32>
    %17 = math.rsqrt %16 : vector<64x1xf32>
    %18 = arith.mulf %14, %17 : vector<64x1xf32>
    %19 = vector.broadcast %18 : vector<64x1xf32> to vector<64x32xf32>
    %20 = arith.mulf %8, %19 : vector<64x32xf32>
    %c0_10 = arith.constant 0 : index
    %c0_11 = arith.constant 0 : index
    %21 = vector.load %arg3[%c0_10, %c0_11] : memref<64x1xf32, #tpu.memory_space<vmem>>, vector<64x1xf32>
    %22 = vector.broadcast %21 : vector<64x1xf32> to vector<64x32xf32>
    %23 = arith.addf %20, %22 : vector<64x32xf32>
    %cst_12 = arith.constant 2.000000e-01 : f32
    %24 = vector.broadcast %cst_12 : f32 to vector<64x32xf32>
    %25 = arith.mulf %24, %23 : vector<64x32xf32>
    %26 = arith.maximumf %23, %25 : vector<64x32xf32>
    %c0_13 = arith.constant 0 : index
    %c0_14 = arith.constant 0 : index
    %27 = vector.load %arg4[%c0_13, %c0_14] : memref<64x32xf32, #tpu.memory_space<vmem>>, vector<64x32xf32>
    %28 = arith.mulf %26, %27 : vector<64x32xf32>
    %cst_15 = arith.constant dense<0.000000e+00> : vector<32xf32>
    %29 = vector.multi_reduction <add>, %28, %cst_15 [0] : vector<64x32xf32> to vector<32xf32>
    %30 = vector.shape_cast %29 : vector<32xf32> to vector<1x32xf32>
    %c0_16 = arith.constant 0 : index
    %c0_17 = arith.constant 0 : index
    %31 = vector.load %arg5[%c0_16, %c0_17] : memref<32x2xf32, #tpu.memory_space<vmem>>, vector<32x2xf32>
    %cst_18 = arith.constant dense<0.000000e+00> : vector<1x2xf32>
    %32 = tpu.matmul %30, %31, %cst_18 {dimension_numbers = #tpu.dot_dimension_numbers<[1], [0], [0], [1], [0, 0, 1, 1], [], []>} : vector<1x32xf32>, vector<32x2xf32>, vector<1x2xf32> -> vector<1x2xf32>
    %33 = arith.negf %32 : vector<1x2xf32>
    %34 = math.exp %33 : vector<1x2xf32>
    %cst_19 = arith.constant 1.000000e+00 : f32
    %35 = vector.broadcast %cst_19 : f32 to vector<1x2xf32>
    %36 = arith.addf %35, %34 : vector<1x2xf32>
    %37 = arith.divf %35, %36 : vector<1x2xf32>
    %c0_20 = arith.constant 0 : index
    %c0_21 = arith.constant 0 : index
    %38 = vector.load %arg6[%c0_20, %c0_21] : memref<1x2xf32, #tpu.memory_space<vmem>>, vector<1x2xf32>
    tpu.vector_store %arg6[%c0_20, %c0_21], %37 {strides = array<i32>} : memref<1x2xf32, #tpu.memory_space<vmem>>, vector<1x2xf32>,
    return
  }
}

</mosaic_0001>

<llo_original>
// kernel: discriminator_forward.4
$region0: #{discriminator_forward.4}
  #allocation0 [shape = 'u32[]', space=smem, size = 0x4, offset = 0x4, fixed_abs, tag = 'smem constant byte address 0x4 - core index']
  #allocation1 [shape = 'u32[144,128]{1,0:T(1,128)}', space=vmem, size = 0x12000, scoped, tag = 'internal scratch']
  %s0 = inlined_call_operand.vmem [shape: bf16[8,64], index: 0, kind: input, shape index: {}]
  %s1 = inlined_call_operand.vmem [shape: bf16[64,2048], index: 1, kind: input, shape index: {}]
  %s2 = inlined_call_operand.vmem [shape: bf16[8,2048], index: 2, kind: output, shape index: {}]
  %s3 = sld [smem:[#allocation0]]
  $region18: #{discriminator_forward.4} parent=0
    _
  %s5 = ssub.s32 1, %s3
  %s6 = scalar_select 0, %s5, %s3
  // Predicated region
  $region2: #{discriminator_forward.4} parent=0 // pred_check
    _
  $region3: #{discriminator_forward.4} parent=0 // pred_check_branch
    %8 = sbr.rel (0) target = $region5
  $region4: #{discriminator_forward.4} parent=0 // pred_region
    _
  $region5: #{discriminator_forward.4} parent=0 // pred_fallthru
    _
  // Predicated region
  $region6: #{discriminator_forward.4} parent=0 // pred_check
    _
  $region7: #{discriminator_forward.4} parent=0 // pred_check_branch
    %10 = sbr.rel (0) target = $region9
  $region8: #{discriminator_forward.4} parent=0 // pred_region
    _
  $region9: #{discriminator_forward.4} parent=0 // pred_fallthru
    _
  %v12 = vld [vmem:[%s0] sm:$0xf]
  %v13 = vld [vmem:[%s1] sm:$0xff]
  %v14 = vld [vmem:[%s1 + $0x8] sm:$0xff]
  %v15 = vld [vmem:[%s1 + $0x10] sm:$0xff]
  %v16 = vld [vmem:[%s1 + $0x18] sm:$0xff]
  %v17 = vld [vmem:[%s1 + $0x20] sm:$0xff]
  %v18 = vld [vmem:[%s1 + $0x28] sm:$0xff]
  %v19 = vld [vmem:[%s1 + $0x30] sm:$0xff]
  %v20 = vld [vmem:[%s1 + $0x38] sm:$0xff]
  %v21 = vld [vmem:[%s1 + $0x40] sm:$0xff]
  %v22 = vld [vmem:[%s1 + $0x48] sm:$0xff]
  %v23 = vld [vmem:[%s1 + $0x50] sm:$0xff]
  %v24 = vld [vmem:[%s1 + $0x58] sm:$0xff]
  %v25 = vld [vmem:[%s1 + $0x60] sm:$0xff]
  %v26 = vld [vmem:[%s1 + $0x68] sm:$0xff]
  %v27 = vld [vmem:[%s1 + $0x70] sm:$0xff]
  %v28 = vld [vmem:[%s1 + $0x78] sm:$0xff]
  %v29 = vld [vmem:[%s1 + $0x80] sm:$0xff]
  %v30 = vld [vmem:[%s1 + $0x88] sm:$0xff]
  %v31 = vld [vmem:[%s1 + $0x90] sm:$0xff]
  %v32 = vld [vmem:[%s1 + $0x98] sm:$0xff]
  %v33 = vld [vmem:[%s1 + $0xa0] sm:$0xff]
  %v34 = vld [vmem:[%s1 + $0xa8] sm:$0xff]
  %v35 = vld [vmem:[%s1 + $0xb0] sm:$0xff]
  %v36 = vld [vmem:[%s1 + $0xb8] sm:$0xff]
  %v37 = vld [vmem:[%s1 + $0xc0] sm:$0xff]
  %v38 = vld [vmem:[%s1 + $0xc8] sm:$0xff]
  %v39 = vld [vmem:[%s1 + $0xd0] sm:$0xff]
  %v40 = vld [vmem:[%s1 + $0xd8] sm:$0xff]
  %v41 = vld [vmem:[%s1 + $0xe0] sm:$0xff]
  %v42 = vld [vmem:[%s1 + $0xe8] sm:$0xff]
  %v43 = vld [vmem:[%s1 + $0xf0] sm:$0xff]
  %v44 = vld [vmem:[%s1 + $0xf8] sm:$0xff]
  %v45 = vld [vmem:[%s1 + $0x100] sm:$0xff]
  %v46 = vld [vmem:[%s1 + $0x108] sm:$0xff]
  %v47 = vld [vmem:[%s1 + $0x110] sm:$0xff]
  %v48 = vld [vmem:[%s1 + $0x118] sm:$0xff]
  %v49 = vld [vmem:[%s1 + $0x120] sm:$0xff]
  %v50 = vld [vmem:[%s1 + $0x128] sm:$0xff]
  %v51 = vld [vmem:[%s1 + $0x130] sm:$0xff]
  %v52 = vld [vmem:[%s1 + $0x138] sm:$0xff]
  %v53 = vld [vmem:[%s1 + $0x140] sm:$0xff]
  %v54 = vld [vmem:[%s1 + $0x148] sm:$0xff]
  %v55 = vld [vmem:[%s1 + $0x150] sm:$0xff]
  %v56 = vld [vmem:[%s1 + $0x158] sm:$0xff]
  %v57 = vld [vmem:[%s1 + $0x160] sm:$0xff]
  %v58 = vld [vmem:[%s1 + $0x168] sm:$0xff]
  %v59 = vld [vmem:[%s1 + $0x170] sm:$0xff]
  %v60 = vld [vmem:[%s1 + $0x178] sm:$0xff]
  %v61 = vld [vmem:[%s1 + $0x180] sm:$0xff]
  %v62 = vld [vmem:[%s1 + $0x188] sm:$0xff]
  %v63 = vld [vmem:[%s1 + $0x190] sm:$0xff]
  %v64 = vld [vmem:[%s1 + $0x198] sm:$0xff]
  %v65 = vld [vmem:[%s1 + $0x1a0] sm:$0xff]
  %v66 = vld [vmem:[%s1 + $0x1a8] sm:$0xff]
  %v67 = vld [vmem:[%s1 + $0x1b0] sm:$0xff]
  %v68 = vld [vmem:[%s1 + $0x1b8] sm:$0xff]
  %v69 = vld [vmem:[%s1 + $0x1c0] sm:$0xff]
  %v70 = vld [vmem:[%s1 + $0x1c8] sm:$0xff]
  %v71 = vld [vmem:[%s1 + $0x1d0] sm:$0xff]
  %v72 = vld [vmem:[%s1 + $0x1d8] sm:$0xff]
  %v73 = vld [vmem:[%s1 + $0x1e0] sm:$0xff]
  %v74 = vld [vmem:[%s1 + $0x1e8] sm:$0xff]
  %v75 = vld [vmem:[%s1 + $0x1f0] sm:$0xff]
  %v76 = vld [vmem:[%s1 + $0x1f8] sm:$0xff]
  %v141 = vunpack.c.l.b16 %v13
  %v142 = vunpack.c.h.b16 %v13
  %v143 = vunpack.c.l.b16 %v14
  %v144 = vunpack.c.h.b16 %v14
  %v145 = vunpack.c.l.b16 %v15
  %v146 = vunpack.c.h.b16 %v15
  %v147 = vunpack.c.l.b16 %v16
  %v148 = vunpack.c.h.b16 %v16
  %v149 = vunpack.c.l.b16 %v17
  %v150 = vunpack.c.h.b16 %v17
  %v151 = vunpack.c.l.b16 %v18
  %v152 = vunpack.c.h.b16 %v18
  %v153 = vunpack.c.l.b16 %v19
  %v154 = vunpack.c.h.b16 %v19
  %v155 = vunpack.c.l.b16 %v20
  %v156 = vunpack.c.h.b16 %v20
  %v157 = vunpack.c.l.b16 %v21
  %v158 = vunpack.c.h.b16 %v21
  %v159 = vunpack.c.l.b16 %v22
  %v160 = vunpack.c.h.b16 %v22
  %v161 = vunpack.c.l.b16 %v23
  %v162 = vunpack.c.h.b16 %v23
  %v163 = vunpack.c.l.b16 %v24
  %v164 = vunpack.c.h.b16 %v24
  %v165 = vunpack.c.l.b16 %v25
  %v166 = vunpack.c.h.b16 %v25
  %v167 = vunpack.c.l.b16 %v26
  %v168 = vunpack.c.h.b16 %v26
  %v169 = vunpack.c.l.b16 %v27
  %v170 = vunpack.c.h.b16 %v27
  %v171 = vunpack.c.l.b16 %v28
  %v172 = vunpack.c.h.b16 %v28
  %v173 = vunpack.c.l.b16 %v29
  %v174 = vunpack.c.h.b16 %v29
  %v175 = vunpack.c.l.b16 %v30
  %v176 = vunpack.c.h.b16 %v30
  %v177 = vunpack.c.l.b16 %v31
  %v178 = vunpack.c.h.b16 %v31
  %v179 = vunpack.c.l.b16 %v32
  %v180 = vunpack.c.h.b16 %v32
  %v181 = vunpack.c.l.b16 %v33
  %v182 = vunpack.c.h.b16 %v33
  %v183 = vunpack.c.l.b16 %v34
  %v184 = vunpack.c.h.b16 %v34
  %v185 = vunpack.c.l.b16 %v35
  %v186 = vunpack.c.h.b16 %v35
  %v187 = vunpack.c.l.b16 %v36
  %v188 = vunpack.c.h.b16 %v36
  %v189 = vunpack.c.l.b16 %v37
  %v190 = vunpack.c.h.b16 %v37
  %v191 = vunpack.c.l.b16 %v38
  %v192 = vunpack.c.h.b16 %v38
  %v193 = vunpack.c.l.b16 %v39
  %v194 = vunpack.c.h.b16 %v39
  %v195 = vunpack.c.l.b16 %v40
  %v196 = vunpack.c.h.b16 %v40
  %v197 = vunpack.c.l.b16 %v41
  %v198 = vunpack.c.h.b16 %v41
  %v199 = vunpack.c.l.b16 %v42
  %v200 = vunpack.c.h.b16 %v42
  %v201 = vunpack.c.l.b16 %v43
  %v202 = vunpack.c.h.b16 %v43
  %v203 = vunpack.c.l.b16 %v44
  %v204 = vunpack.c.h.b16 %v44
  %v205 = vunpack.c.l.b16 %v45
  %v206 = vunpack.c.h.b16 %v45
  %v207 = vunpack.c.l.b16 %v46
  %v208 = vunpack.c.h.b16 %v46
  %v209 = vunpack.c.l.b16 %v47
  %v210 = vunpack.c.h.b16 %v47
  %v211 = vunpack.c.l.b16 %v48
  %v212 = vunpack.c.h.b16 %v48
  %v213 = vunpack.c.l.b16 %v49
  %v214 = vunpack.c.h.b16 %v49
  %v215 = vunpack.c.l.b16 %v50
  %v216 = vunpack.c.h.b16 %v50
  %v217 = vunpack.c.l.b16 %v51
  %v218 = vunpack.c.h.b16 %v51
  %v219 = vunpack.c.l.b16 %v52
  %v220 = vunpack.c.h.b16 %v52
  %v221 = vunpack.c.l.b16 %v53
  %v222 = vunpack.c.h.b16 %v53
  %v223 = vunpack.c.l.b16 %v54
  %v224 = vunpack.c.h.b16 %v54
  %v225 = vunpack.c.l.b16 %v55
  %v226 = vunpack.c.h.b16 %v55
  %v227 = vunpack.c.l.b16 %v56
  %v228 = vunpack.c.h.b16 %v56
  %v229 = vunpack.c.l.b16 %v57
  %v230 = vunpack.c.h.b16 %v57
  %v231 = vunpack.c.l.b16 %v58
  %v232 = vunpack.c.h.b16 %v58
  %v233 = vunpack.c.l.b16 %v59
  %v234 = vunpack.c.h.b16 %v59
  %v235 = vunpack.c.l.b16 %v60
  %v236 = vunpack.c.h.b16 %v60
  %v237 = vunpack.c.l.b16 %v61
  %v238 = vunpack.c.h.b16 %v61
  %v239 = vunpack.c.l.b16 %v62
  %v240 = vunpack.c.h.b16 %v62
  %v241 = vunpack.c.l.b16 %v63
  %v242 = vunpack.c.h.b16 %v63
  %v243 = vunpack.c.l.b16 %v64
  %v244 = vunpack.c.h.b16 %v64
  %v245 = vunpack.c.l.b16 %v65
  %v246 = vunpack.c.h.b16 %v65
  %v247 = vunpack.c.l.b16 %v66
  %v248 = vunpack.c.h.b16 %v66
  %v249 = vunpack.c.l.b16 %v67
  %v250 = vunpack.c.h.b16 %v67
  %v251 = vunpack.c.l.b16 %v68
  %v252 = vunpack.c.h.b16 %v68
  %v253 = vunpack.c.l.b16 %v69
  %v254 = vunpack.c.h.b16 %v69
  %v255 = vunpack.c.l.b16 %v70
  %v256 = vunpack.c.h.b16 %v70
  %v257 = vunpack.c.l.b16 %v71
  %v258 = vunpack.c.h.b16 %v71
  %v259 = vunpack.c.l.b16 %v72
  %v260 = vunpack.c.h.b16 %v72
  %v261 = vunpack.c.l.b16 %v73
  %v262 = vunpack.c.h.b16 %v73
  %v263 = vunpack.c.l.b16 %v74
  %v264 = vunpack.c.h.b16 %v74
  %v265 = vunpack.c.l.b16 %v75
  %v266 = vunpack.c.h.b16 %v75
  %v267 = vunpack.c.l.b16 %v76
  %v268 = vunpack.c.h.b16 %v76
  %v269 = vpack.c.b16 %v157, %v141
  %v270 = vpack.c.b16 %v158, %v142
  %v271 = vpack.c.b16 %v159, %v143
  %v272 = vpack.c.b16 %v160, %v144
  %v273 = vpack.c.b16 %v161, %v145
  %v274 = vpack.c.b16 %v162, %v146
  %v275 = vpack.c.b16 %v163, %v147
  %v276 = vpack.c.b16 %v164, %v148
  %v277 = vpack.c.b16 %v165, %v149
  %v278 = vpack.c.b16 %v166, %v150
  %v279 = vpack.c.b16 %v167, %v151
  %v280 = vpack.c.b16 %v168, %v152
  %v281 = vpack.c.b16 %v169, %v153
  %v282 = vpack.c.b16 %v170, %v154
  %v283 = vpack.c.b16 %v171, %v155
  %v284 = vpack.c.b16 %v172, %v156
  %v285 = vpack.c.b16 %v189, %v173
  %v286 = vpack.c.b16 %v190, %v174
  %v287 = vpack.c.b16 %v191, %v175
  %v288 = vpack.c.b16 %v192, %v176
  %v289 = vpack.c.b16 %v193, %v177
  %v290 = vpack.c.b16 %v194, %v178
  %v291 = vpack.c.b16 %v195, %v179
  %v292 = vpack.c.b16 %v196, %v180
  %v293 = vpack.c.b16 %v197, %v181
  %v294 = vpack.c.b16 %v198, %v182
  %v295 = vpack.c.b16 %v199, %v183
  %v296 = vpack.c.b16 %v200, %v184
  %v297 = vpack.c.b16 %v201, %v185
  %v298 = vpack.c.b16 %v202, %v186
  %v299 = vpack.c.b16 %v203, %v187
  %v300 = vpack.c.b16 %v204, %v188
  %v301 = vpack.c.b16 %v221, %v205
  %v302 = vpack.c.b16 %v222, %v206
  %v303 = vpack.c.b16 %v223, %v207
  %v304 = vpack.c.b16 %v224, %v208
  %v305 = vpack.c.b16 %v225, %v209
  %v306 = vpack.c.b16 %v226, %v210
  %v307 = vpack.c.b16 %v227, %v211
  %v308 = vpack.c.b16 %v228, %v212
  %v309 = vpack.c.b16 %v229, %v213
  %v310 = vpack.c.b16 %v230, %v214
  %v311 = vpack.c.b16 %v231, %v215
  %v312 = vpack.c.b16 %v232, %v216
  %v313 = vpack.c.b16 %v233, %v217
  %v314 = vpack.c.b16 %v234, %v218
  %v315 = vpack.c.b16 %v235, %v219
  %v316 = vpack.c.b16 %v236, %v220
  %v317 = vpack.c.b16 %v253, %v237
  %v318 = vpack.c.b16 %v254, %v238
  %v319 = vpack.c.b16 %v255, %v239
  %v320 = vpack.c.b16 %v256, %v240
  %v321 = vpack.c.b16 %v257, %v241
  %v322 = vpack.c.b16 %v258, %v242
  %v323 = vpack.c.b16 %v259, %v243
  %v324 = vpack.c.b16 %v260, %v244
  %v325 = vpack.c.b16 %v261, %v245
  %v326 = vpack.c.b16 %v262, %v246
  %v327 = vpack.c.b16 %v263, %v247
  %v328 = vpack.c.b16 %v264, %v248
  %v329 = vpack.c.b16 %v265, %v249
  %v330 = vpack.c.b16 %v266, %v250
  %v331 = vpack.c.b16 %v267, %v251
  %v332 = vpack.c.b16 %v268, %v252
  %vm397 = vcmask 523264
  %v399 = vsel %vm397, %v12, 0
  %401 = vmatprep.subr.bf16.mxu0 %v270
  %402 = vmatpush1.bf16.msra.mxu0 %v269
  %403 = vmatprep.subr.bf16.mxu0 %v286
  %404 = vmatpush1.bf16.msra.mxu0 %v285
  %405 = vmatprep.subr.bf16.mxu0 %v302
  %406 = vmatpush1.bf16.msra.mxu0 %v301
  %407 = vmatprep.subr.bf16.mxu0 %v318
  %408 = vmatpush1.bf16.msra.mxu0 %v317
  %409 = vmatprep.subr.bf16.mxu0 0
  %410 = vmatpush1.bf16.msra.mxu0 0
  %411 = vmatprep.subr.bf16.mxu0 0
  %412 = vmatpush1.bf16.msra.mxu0 0
  %413 = vmatprep.subr.bf16.mxu0 0
  %414 = vmatpush1.bf16.msra.mxu0 0
  %415 = vmatprep.subr.bf16.mxu0 0
  %416 = vmatpush1.bf16.msra.mxu0 0
  %417 = vmatprep.subr.bf16.mxu0 0
  %418 = vmatpush1.bf16.msra.mxu0 0
  %419 = vmatprep.subr.bf16.mxu0 0
  %420 = vmatpush1.bf16.msra.mxu0 0
  %421 = vmatprep.subr.bf16.mxu0 0
  %422 = vmatpush1.bf16.msra.mxu0 0
  %423 = vmatprep.subr.bf16.mxu0 0
  %424 = vmatpush1.bf16.msra.mxu0 0
  %425 = vmatprep.subr.bf16.mxu0 0
  %426 = vmatpush1.bf16.msra.mxu0 0
  %427 = vmatprep.subr.bf16.mxu0 0
  %428 = vmatpush1.bf16.msra.mxu0 0
  %429 = vmatprep.subr.bf16.mxu0 0
  %430 = vmatpush1.bf16.msra.mxu0 0
  %431 = vmatprep.subr.bf16.mxu0 0
  %432 = vmatpush1.bf16.msra.mxu0 0
  %433 = vmatprep.mubr.bf16.mxu0 0
  %434 = vmatmul.mubr.bf16.gmra.mrb[0].mxu0 %v399
  %v435 = vpop.f32.mrb[0].mxu0
  %v436 = vadd.f32 0.0, %v435
  %v437 = vpop.f32.mrb[0].mxu0
  %v438 = vadd.f32 0.0, %v437
  %v439 = vpop.f32.mrb[0].mxu0
  %v440 = vpop.f32.mrb[0].mxu0
  %441 = vdwg.mxu0
  %442 = vmatprep.subr.bf16.mxu0 %v272
  %443 = vmatpush1.bf16.msra.mxu0 %v271
  %444 = vmatprep.subr.bf16.mxu0 %v288
  %445 = vmatpush1.bf16.msra.mxu0 %v287
  %446 = vmatprep.subr.bf16.mxu0 %v304
  %447 = vmatpush1.bf16.msra.mxu0 %v303
  %448 = vmatprep.subr.bf16.mxu0 %v320
  %449 = vmatpush1.bf16.msra.mxu0 %v319
  %450 = vmatprep.subr.bf16.mxu0 0
  %451 = vmatpush1.bf16.msra.mxu0 0
  %452 = vmatprep.subr.bf16.mxu0 0
  %453 = vmatpush1.bf16.msra.mxu0 0
  %454 = vmatprep.subr.bf16.mxu0 0
  %455 = vmatpush1.bf16.msra.mxu0 0
  %456 = vmatprep.subr.bf16.mxu0 0
  %457 = vmatpush1.bf16.msra.mxu0 0
  %458 = vmatprep.subr.bf16.mxu0 0
  %459 = vmatpush1.bf16.msra.mxu0 0
  %460 = vmatprep.subr.bf16.mxu0 0
  %461 = vmatpush1.bf16.msra.mxu0 0
  %462 = vmatprep.subr.bf16.mxu0 0
  %463 = vmatpush1.bf16.msra.mxu0 0
  %464 = vmatprep.subr.bf16.mxu0 0
  %465 = vmatpush1.bf16.msra.mxu0 0
  %466 = vmatprep.subr.bf16.mxu0 0
  %467 = vmatpush1.bf16.msra.mxu0 0
  %468 = vmatprep.subr.bf16.mxu0 0
  %469 = vmatpush1.bf16.msra.mxu0 0
  %470 = vmatprep.subr.bf16.mxu0 0
  %471 = vmatpush1.bf16.msra.mxu0 0
  %472 = vmatprep.subr.bf16.mxu0 0
  %473 = vmatpush1.bf16.msra.mxu0 0
  %474 = vmatprep.mubr.bf16.mxu0 0
  %475 = vmatmul.mubr.bf16.gmra.mrb[0].mxu0 %v399
  %v476 = vpop.f32.mrb[0].mxu0
  %v477 = vadd.f32 0.0, %v476
  %v478 = vpop.f32.mrb[0].mxu0
  %v479 = vadd.f32 0.0, %v478
  %v480 = vpop.f32.mrb[0].mxu0
  %v481 = vpop.f32.mrb[0].mxu0
  %482 = vdwg.mxu0
  %483 = vmatprep.subr.bf16.mxu0 %v274
  %484 = vmatpush1.bf16.msra.mxu0 %v273
  %485 = vmatprep.subr.bf16.mxu0 %v290
  %486 = vmatpush1.bf16.msra.mxu0 %v289
  %487 = vmatprep.subr.bf16.mxu0 %v306
  %488 = vmatpush1.bf16.msra.mxu0 %v305
  %489 = vmatprep.subr.bf16.mxu0 %v322
  %490 = vmatpush1.bf16.msra.mxu0 %v321
  %491 = vmatprep.subr.bf16.mxu0 0
  %492 = vmatpush1.bf16.msra.mxu0 0
  %493 = vmatprep.subr.bf16.mxu0 0
  %494 = vmatpush1.bf16.msra.mxu0 0
  %495 = vmatprep.subr.bf16.mxu0 0
  %496 = vmatpush1.bf16.msra.mxu0 0
  %497 = vmatprep.subr.bf16.mxu0 0
  %498 = vmatpush1.bf16.msra.mxu0 0
  %499 = vmatprep.subr.bf16.mxu0 0
  %500 = vmatpush1.bf16.msra.mxu0 0
  %501 = vmatprep.subr.bf16.mxu0 0
  %502 = vmatpush1.bf16.msra.mxu0 0
  %503 = vmatprep.subr.bf16.mxu0 0
  %504 = vmatpush1.bf16.msra.mxu0 0
  %505 = vmatprep.subr.bf16.mxu0 0
  %506 = vmatpush1.bf16.msra.mxu0 0
  %507 = vmatprep.subr.bf16.mxu0 0
  %508 = vmatpush1.bf16.msra.mxu0 0
  %509 = vmatprep.subr.bf16.mxu0 0
  %510 = vmatpush1.bf16.msra.mxu0 0
  %511 = vmatprep.subr.bf16.mxu0 0
  %512 = vmatpush1.bf16.msra.mxu0 0
  %513 = vmatprep.subr.bf16.mxu0 0
  %514 = vmatpush1.bf16.msra.mxu0 0
  %515 = vmatprep.mubr.bf16.mxu0 0
  %516 = vmatmul.mubr.bf16.gmra.mrb[0].mxu0 %v399
  %v517 = vpop.f32.mrb[0].mxu0
  %v518 = vadd.f32 0.0, %v517
  %v519 = vpop.f32.mrb[0].mxu0
  %v520 = vadd.f32 0.0, %v519
  %v521 = vpop.f32.mrb[0].mxu0
  %v522 = vpop.f32.mrb[0].mxu0
  %523 = vdwg.mxu0
  %524 = vmatprep.subr.bf16.mxu0 %v276
  %525 = vmatpush1.bf16.msra.mxu0 %v275
  %526 = vmatprep.subr.bf16.mxu0 %v292
  %527 = vmatpush1.bf16.msra.mxu0 %v291
  %528 = vmatprep.subr.bf16.mxu0 %v308
  %529 = vmatpush1.bf16.msra.mxu0 %v307
  %530 = vmatprep.subr.bf16.mxu0 %v324
  %531 = vmatpush1.bf16.msra.mxu0 %v323
  %532 = vmatprep.subr.bf16.mxu0 0
  %533 = vmatpush1.bf16.msra.mxu0 0
  %534 = vmatprep.subr.bf16.mxu0 0
  %535 = vmatpush1.bf16.msra.mxu0 0
  %536 = vmatprep.subr.bf16.mxu0 0
  %537 = vmatpush1.bf16.msra.mxu0 0
  %538 = vmatprep.subr.bf16.mxu0 0
  %539 = vmatpush1.bf16.msra.mxu0 0
  %540 = vmatprep.subr.bf16.mxu0 0
  %541 = vmatpush1.bf16.msra.mxu0 0
  %542 = vmatprep.subr.bf16.mxu0 0
  %543 = vmatpush1.bf16.msra.mxu0 0
  %544 = vmatprep.subr.bf16.mxu0 0
  %545 = vmatpush1.bf16.msra.mxu0 0
  %546 = vmatprep.subr.bf16.mxu0 0
  %547 = vmatpush1.bf16.msra.mxu0 0
  %548 = vmatprep.subr.bf16.mxu0 0
  %549 = vmatpush1.bf16.msra.mxu0 0
  %550 = vmatprep.subr.bf16.mxu0 0
  %551 = vmatpush1.bf16.msra.mxu0 0
  %552 = vmatprep.subr.bf16.mxu0 0
  %553 = vmatpush1.bf16.msra.mxu0 0
  %554 = vmatprep.subr.bf16.mxu0 0
  %555 = vmatpush1.bf16.msra.mxu0 0
  %556 = vmatprep.mubr.bf16.mxu0 0
  %557 = vmatmul.mubr.bf16.gmra.mrb[0].mxu0 %v399
  %v558 = vpop.f32.mrb[0].mxu0
  %v559 = vadd.f32 0.0, %v558
  %v560 = vpop.f32.mrb[0].mxu0
  %v561 = vadd.f32 0.0, %v560
  %v562 = vpop.f32.mrb[0].mxu0
  %v563 = vpop.f32.mrb[0].mxu0
  %564 = vdwg.mxu0
  %565 = vmatprep.subr.bf16.mxu0 %v278
  %566 = vmatpush1.bf16.msra.mxu0 %v277
  %567 = vmatprep.subr.bf16.mxu0 %v294
  %568 = vmatpush1.bf16.msra.mxu0 %v293
  %569 = vmatprep.subr.bf16.mxu0 %v310
  %570 = vmatpush1.bf16.msra.mxu0 %v309
  %571 = vmatprep.subr.bf16.mxu0 %v326
  %572 = vmatpush1.bf16.msra.mxu0 %v325
  %573 = vmatprep.subr.bf16.mxu0 0
  %574 = vmatpush1.bf16.msra.mxu0 0
  %575 = vmatprep.subr.bf16.mxu0 0
  %576 = vmatpush1.bf16.msra.mxu0 0
  %577 = vmatprep.subr.bf16.mxu0 0
  %578 = vmatpush1.bf16.msra.mxu0 0
  %579 = vmatprep.subr.bf16.mxu0 0
  %580 = vmatpush1.bf16.msra.mxu0 0
  %581 = vmatprep.subr.bf16.mxu0 0
  %582 = vmatpush1.bf16.msra.mxu0 0
  %583 = vmatprep.subr.bf16.mxu0 0
  %584 = vmatpush1.bf16.msra.mxu0 0
  %585 = vmatprep.subr.bf16.mxu0 0
  %586 = vmatpush1.bf16.msra.mxu0 0
  %587 = vmatprep.subr.bf16.mxu0 0
  %588 = vmatpush1.bf16.msra.mxu0 0
  %589 = vmatprep.subr.bf16.mxu0 0
  %590 = vmatpush1.bf16.msra.mxu0 0
  %591 = vmatprep.subr.bf16.mxu0 0
  %592 = vmatpush1.bf16.msra.mxu0 0
  %593 = vmatprep.subr.bf16.mxu0 0
  %594 = vmatpush1.bf16.msra.mxu0 0
  %595 = vmatprep.subr.bf16.mxu0 0
  %596 = vmatpush1.bf16.msra.mxu0 0
  %597 = vmatprep.mubr.bf16.mxu0 0
  %598 = vmatmul.mubr.bf16.gmra.mrb[0].mxu0 %v399
  %v599 = vpop.f32.mrb[0].mxu0
  %v600 = vadd.f32 0.0, %v599
  %v601 = vpop.f32.mrb[0].mxu0
  %v602 = vadd.f32 0.0, %v601
  %v603 = vpop.f32.mrb[0].mxu0
  %v604 = vpop.f32.mrb[0].mxu0
  %605 = vdwg.mxu0
  %606 = vmatprep.subr.bf16.mxu0 %v280
  %607 = vmatpush1.bf16.msra.mxu0 %v279
  %608 = vmatprep.subr.bf16.mxu0 %v296
  %609 = vmatpush1.bf16.msra.mxu0 %v295
  %610 = vmatprep.subr.bf16.mxu0 %v312
  %611 = vmatpush1.bf16.msra.mxu0 %v311
  %612 = vmatprep.subr.bf16.mxu0 %v328
  %613 = vmatpush1.bf16.msra.mxu0 %v327
  %614 = vmatprep.subr.bf16.mxu0 0
  %615 = vmatpush1.bf16.msra.mxu0 0
  %616 = vmatprep.subr.bf16.mxu0 0
  %617 = vmatpush1.bf16.msra.mxu0 0
  %618 = vmatprep.subr.bf16.mxu0 0
  %619 = vmatpush1.bf16.msra.mxu0 0
  %620 = vmatprep.subr.bf16.mxu0 0
  %621 = vmatpush1.bf16.msra.mxu0 0
  %622 = vmatprep.subr.bf16.mxu0 0
  %623 = vmatpush1.bf16.msra.mxu0 0
  %624 = vmatprep.subr.bf16.mxu0 0
  %625 = vmatpush1.bf16.msra.mxu0 0
  %626 = vmatprep.subr.bf16.mxu0 0
  %627 = vmatpush1.bf16.msra.mxu0 0
  %628 = vmatprep.subr.bf16.mxu0 0
  %629 = vmatpush1.bf16.msra.mxu0 0
  %630 = vmatprep.subr.bf16.mxu0 0
  %631 = vmatpush1.bf16.msra.mxu0 0
  %632 = vmatprep.subr.bf16.mxu0 0
  %633 = vmatpush1.bf16.msra.mxu0 0
  %634 = vmatprep.subr.bf16.mxu0 0
  %635 = vmatpush1.bf16.msra.mxu0 0
  %636 = vmatprep.subr.bf16.mxu0 0
  %637 = vmatpush1.bf16.msra.mxu0 0
  %638 = vmatprep.mubr.bf16.mxu0 0
  %639 = vmatmul.mubr.bf16.gmra.mrb[0].mxu0 %v399
  %v640 = vpop.f32.mrb[0].mxu0
  %v641 = vadd.f32 0.0, %v640
  %v642 = vpop.f32.mrb[0].mxu0
  %v643 = vadd.f32 0.0, %v642
  %v644 = vpop.f32.mrb[0].mxu0
  %v645 = vpop.f32.mrb[0].mxu0
  %646 = vdwg.mxu0
  %647 = vmatprep.subr.bf16.mxu0 %v282
  %648 = vmatpush1.bf16.msra.mxu0 %v281
  %649 = vmatprep.subr.bf16.mxu0 %v298
  %650 = vmatpush1.bf16.msra.mxu0 %v297
  %651 = vmatprep.subr.bf16.mxu0 %v314
  %652 = vmatpush1.bf16.msra.mxu0 %v313
  %653 = vmatprep.subr.bf16.mxu0 %v330
  %654 = vmatpush1.bf16.msra.mxu0 %v329
  %655 = vmatprep.subr.bf16.mxu0 0
  %656 = vmatpush1.bf16.msra.mxu0 0
  %657 = vmatprep.subr.bf16.mxu0 0
  %658 = vmatpush1.bf16.msra.mxu0 0
  %659 = vmatprep.subr.bf16.mxu0 0
  %660 = vmatpush1.bf16.msra.mxu0 0
  %661 = vmatprep.subr.bf16.mxu0 0
  %662 = vmatpush1.bf16.msra.mxu0 0
  %663 = vmatprep.subr.bf16.mxu0 0
  %664 = vmatpush1.bf16.msra.mxu0 0
  %665 = vmatprep.subr.bf16.mxu0 0
  %666 = vmatpush1.bf16.msra.mxu0 0
  %667 = vmatprep.subr.bf16.mxu0 0
  %668 = vmatpush1.bf16.msra.mxu0 0
  %669 = vmatprep.subr.bf16.mxu0 0
  %670 = vmatpush1.bf16.msra.mxu0 0
  %671 = vmatprep.subr.bf16.mxu0 0
  %672 = vmatpush1.bf16.msra.mxu0 0
  %673 = vmatprep.subr.bf16.mxu0 0
  %674 = vmatpush1.bf16.msra.mxu0 0
  %675 = vmatprep.subr.bf16.mxu0 0
  %676 = vmatpush1.bf16.msra.mxu0 0
  %677 = vmatprep.subr.bf16.mxu0 0
  %678 = vmatpush1.bf16.msra.mxu0 0
  %679 = vmatprep.mubr.bf16.mxu0 0
  %680 = vmatmul.mubr.bf16.gmra.mrb[0].mxu0 %v399
  %v681 = vpop.f32.mrb[0].mxu0
  %v682 = vadd.f32 0.0, %v681
  %v683 = vpop.f32.mrb[0].mxu0
  %v684 = vadd.f32 0.0, %v683
  %v685 = vpop.f32.mrb[0].mxu0
  %v686 = vpop.f32.mrb[0].mxu0
  %687 = vdwg.mxu0
  %688 = vmatprep.subr.bf16.mxu0 %v284
  %689 = vmatpush1.bf16.msra.mxu0 %v283
  %690 = vmatprep.subr.bf16.mxu0 %v300
  %691 = vmatpush1.bf16.msra.mxu0 %v299
  %692 = vmatprep.subr.bf16.mxu0 %v316
  %693 = vmatpush1.bf16.msra.mxu0 %v315
  %694 = vmatprep.subr.bf16.mxu0 %v332
  %695 = vmatpush1.bf16.msra.mxu0 %v331
  %696 = vmatprep.subr.bf16.mxu0 0
  %697 = vmatpush1.bf16.msra.mxu0 0
  %698 = vmatprep.subr.bf16.mxu0 0
  %699 = vmatpush1.bf16.msra.mxu0 0
  %700 = vmatprep.subr.bf16.mxu0 0
  %701 = vmatpush1.bf16.msra.mxu0 0
  %702 = vmatprep.subr.bf16.mxu0 0
  %703 = vmatpush1.bf16.msra.mxu0 0
  %704 = vmatprep.subr.bf16.mxu0 0
  %705 = vmatpush1.bf16.msra.mxu0 0
  %706 = vmatprep.subr.bf16.mxu0 0
  %707 = vmatpush1.bf16.msra.mxu0 0
  %708 = vmatprep.subr.bf16.mxu0 0
  %709 = vmatpush1.bf16.msra.mxu0 0
  %710 = vmatprep.subr.bf16.mxu0 0
  %711 = vmatpush1.bf16.msra.mxu0 0
  %712 = vmatprep.subr.bf16.mxu0 0
  %713 = vmatpush1.bf16.msra.mxu0 0
  %714 = vmatprep.subr.bf16.mxu0 0
  %715 = vmatpush1.bf16.msra.mxu0 0
  %716 = vmatprep.subr.bf16.mxu0 0
  %717 = vmatpush1.bf16.msra.mxu0 0
  %718 = vmatprep.subr.bf16.mxu0 0
  %719 = vmatpush1.bf16.msra.mxu0 0
  %720 = vmatprep.mubr.bf16.mxu0 0
  %721 = vmatmul.mubr.bf16.gmra.mrb[0].mxu0 %v399
  %v722 = vpop.f32.mrb[0].mxu0
  %v723 = vadd.f32 0.0, %v722
  %v724 = vpop.f32.mrb[0].mxu0
  %v725 = vadd.f32 0.0, %v724
  %v726 = vpop.f32.mrb[0].mxu0
  %v727 = vpop.f32.mrb[0].mxu0
  %728 = vdwg.mxu0
  %v729 = vmul.f32 %v436, 0.2
  %v730 = vmul.f32 %v438, 0.2
  %v731 = vmul.f32 %v477, 0.2
  %v732 = vmul.f32 %v479, 0.2
  %v733 = vmul.f32 %v518, 0.2
  %v734 = vmul.f32 %v520, 0.2
  %v735 = vmul.f32 %v559, 0.2
  %v736 = vmul.f32 %v561, 0.2
  %v737 = vmul.f32 %v600, 0.2
  %v738 = vmul.f32 %v602, 0.2
  %v739 = vmul.f32 %v641, 0.2
  %v740 = vmul.f32 %v643, 0.2
  %v741 = vmul.f32 %v682, 0.2
  %v742 = vmul.f32 %v684, 0.2
  %v743 = vmul.f32 %v723, 0.2
  %v744 = vmul.f32 %v725, 0.2
  %v745 = vmax.f32 %v436, %v729
  %v746 = vmax.f32 %v438, %v730
  %v747 = vmax.f32 %v477, %v731
  %v748 = vmax.f32 %v479, %v732
  %v749 = vmax.f32 %v518, %v733
  %v750 = vmax.f32 %v520, %v734
  %v751 = vmax.f32 %v559, %v735
  %v752 = vmax.f32 %v561, %v736
  %v753 = vmax.f32 %v600, %v737
  %v754 = vmax.f32 %v602, %v738
  %v755 = vmax.f32 %v641, %v739
  %v756 = vmax.f32 %v643, %v740
  %v757 = vmax.f32 %v682, %v741
  %v758 = vmax.f32 %v684, %v742
  %v759 = vmax.f32 %v723, %v743
  %v760 = vmax.f32 %v725, %v744
  %v761 = vpack.c.bf16 %v745, %v745
  %v762 = vpack.c.bf16 %v746, %v746
  %v763 = vpack.c.bf16 %v747, %v747
  %v764 = vpack.c.bf16 %v748, %v748
  %v765 = vpack.c.bf16 %v749, %v749
  %v766 = vpack.c.bf16 %v750, %v750
  %v767 = vpack.c.bf16 %v751, %v751
  %v768 = vpack.c.bf16 %v752, %v752
  %v769 = vpack.c.bf16 %v753, %v753
  %v770 = vpack.c.bf16 %v754, %v754
  %v771 = vpack.c.bf16 %v755, %v755
  %v772 = vpack.c.bf16 %v756, %v756
  %v773 = vpack.c.bf16 %v757, %v757
  %v774 = vpack.c.bf16 %v758, %v758
  %v775 = vpack.c.bf16 %v759, %v759
  %v776 = vpack.c.bf16 %v760, %v760
  %v793 = vunpack.c.l.b16 %v761
  %v794 = vunpack.c.l.b16 %v762
  %v795 = vunpack.c.l.b16 %v763
  %v796 = vunpack.c.l.b16 %v764
  %v797 = vunpack.c.l.b16 %v765
  %v798 = vunpack.c.l.b16 %v766
  %v799 = vunpack.c.l.b16 %v767
  %v800 = vunpack.c.l.b16 %v768
  %v801 = vunpack.c.l.b16 %v769
  %v802 = vunpack.c.l.b16 %v770
  %v803 = vunpack.c.l.b16 %v771
  %v804 = vunpack.c.l.b16 %v772
  %v805 = vunpack.c.l.b16 %v773
  %v806 = vunpack.c.l.b16 %v774
  %v807 = vunpack.c.l.b16 %v775
  %v808 = vunpack.c.l.b16 %v776
  %v809 = vpack.c.b16 %v794, %v793
  %v810 = vpack.c.b16 %v796, %v795
  %v811 = vpack.c.b16 %v798, %v797
  %v812 = vpack.c.b16 %v800, %v799
  %v813 = vpack.c.b16 %v802, %v801
  %v814 = vpack.c.b16 %v804, %v803
  %v815 = vpack.c.b16 %v806, %v805
  %v816 = vpack.c.b16 %v808, %v807
  %825 = vst [vmem:[%s2] sm:$0xff] %v809
  %826 = vst [vmem:[%s2 + $0x8] sm:$0xff] %v810
  %827 = vst [vmem:[%s2 + $0x10] sm:$0xff] %v811
  %828 = vst [vmem:[%s2 + $0x18] sm:$0xff] %v812
  %829 = vst [vmem:[%s2 + $0x20] sm:$0xff] %v813
  %830 = vst [vmem:[%s2 + $0x28] sm:$0xff] %v814
  %831 = vst [vmem:[%s2 + $0x30] sm:$0xff] %v815
  %832 = vst [vmem:[%s2 + $0x38] sm:$0xff] %v816
  // Predicated region
  $region10: #{discriminator_forward.4} parent=0 // pred_check
    _
  $region11: #{discriminator_forward.4} parent=0 // pred_check_branch
    %834 = sbr.rel (0) target = $region13
  $region12: #{discriminator_forward.4} parent=0 // pred_region
    _
  $region13: #{discriminator_forward.4} parent=0 // pred_fallthru
    _
  // Predicated region
  $region14: #{discriminator_forward.4} parent=0 // pred_check
    _
  $region15: #{discriminator_forward.4} parent=0 // pred_check_branch
    %836 = sbr.rel (0) target = $region17
  $region16: #{discriminator_forward.4} parent=0 // pred_region
    _
  $region17: #{discriminator_forward.4} parent=0 // pred_fallthru
    _

// kernel: discriminator_forward.5
$region0: #{discriminator_forward.5}
  #allocation0 [shape = 'u32[]', space=smem, size = 0x4, offset = 0x4, fixed_abs, tag = 'smem constant byte address 0x4 - core index']
  #allocation1 [shape = 'u32[144,128]{1,0:T(1,128)}', space=vmem, size = 0x12000, scoped, tag = 'internal scratch']
  %s0 = inlined_call_operand.vmem [shape: bf16[16,128], index: 0, kind: input, shape index: {}]
  %s1 = inlined_call_operand.vmem [shape: bf16[128,512], index: 1, kind: input, shape index: {}]
  %s2 = inlined_call_operand.vmem [shape: f32[16,1], index: 2, kind: input, shape index: {}]
  %s3 = inlined_call_operand.vmem [shape: f32[16,1], index: 3, kind: input, shape index: {}]
  %s4 = inlined_call_operand.vmem [shape: bf16[16,512], index: 4, kind: output, shape index: {}]
  %s5 = sld [smem:[#allocation0]]
  $region26: #{discriminator_forward.5} parent=0
    _
  %s7 = ssub.s32 1, %s5
  %s8 = scalar_select 0, %s7, %s5
  // Predicated region
  $region2: #{discriminator_forward.5} parent=0 // pred_check
    _
  $region3: #{discriminator_forward.5} parent=0 // pred_check_branch
    %10 = sbr.rel (0) target = $region5
  $region4: #{discriminator_forward.5} parent=0 // pred_region
    _
  $region5: #{discriminator_forward.5} parent=0 // pred_fallthru
    _
  // Predicated region
  $region6: #{discriminator_forward.5} parent=0 // pred_check
    _
  $region7: #{discriminator_forward.5} parent=0 // pred_check_branch
    %12 = sbr.rel (0) target = $region9
  $region8: #{discriminator_forward.5} parent=0 // pred_region
    _
  $region9: #{discriminator_forward.5} parent=0 // pred_fallthru
    _
  // Predicated region
  $region10: #{discriminator_forward.5} parent=0 // pred_check
    _
  $region11: #{discriminator_forward.5} parent=0 // pred_check_branch
    %14 = sbr.rel (0) target = $region13
  $region12: #{discriminator_forward.5} parent=0 // pred_region
    _
  $region13: #{discriminator_forward.5} parent=0 // pred_fallthru
    _
  // Predicated region
  $region14: #{discriminator_forward.5} parent=0 // pred_check
    _
  $region15: #{discriminator_forward.5} parent=0 // pred_check_branch
    %16 = sbr.rel (0) target = $region17
  $region16: #{discriminator_forward.5} parent=0 // pred_region
    _
  $region17: #{discriminator_forward.5} parent=0 // pred_fallthru
    _
  %v18 = vld [vmem:[%s0] sm:$0xf]
  %v19 = vld [vmem:[%s0 + $0x4] sm:$0xf]
  %v20 = vld [vmem:[%s1] sm:$0xff]
  %v21 = vld [vmem:[%s1 + $0x8] sm:$0xff]
  %v22 = vld [vmem:[%s1 + $0x10] sm:$0xff]
  %v23 = vld [vmem:[%s1 + $0x18] sm:$0xff]
  %v24 = vld [vmem:[%s1 + $0x20] sm:$0xff]
  %v25 = vld [vmem:[%s1 + $0x28] sm:$0xff]
  %v26 = vld [vmem:[%s1 + $0x30] sm:$0xff]
  %v27 = vld [vmem:[%s1 + $0x38] sm:$0xff]
  %v28 = vld [vmem:[%s1 + $0x40] sm:$0xff]
  %v29 = vld [vmem:[%s1 + $0x48] sm:$0xff]
  %v30 = vld [vmem:[%s1 + $0x50] sm:$0xff]
  %v31 = vld [vmem:[%s1 + $0x58] sm:$0xff]
  %v32 = vld [vmem:[%s1 + $0x60] sm:$0xff]
  %v33 = vld [vmem:[%s1 + $0x68] sm:$0xff]
  %v34 = vld [vmem:[%s1 + $0x70] sm:$0xff]
  %v35 = vld [vmem:[%s1 + $0x78] sm:$0xff]
  %v36 = vld [vmem:[%s1 + $0x80] sm:$0xff]
  %v37 = vld [vmem:[%s1 + $0x88] sm:$0xff]
  %v38 = vld [vmem:[%s1 + $0x90] sm:$0xff]
  %v39 = vld [vmem:[%s1 + $0x98] sm:$0xff]
  %v40 = vld [vmem:[%s1 + $0xa0] sm:$0xff]
  %v41 = vld [vmem:[%s1 + $0xa8] sm:$0xff]
  %v42 = vld [vmem:[%s1 + $0xb0] sm:$0xff]
  %v43 = vld [vmem:[%s1 + $0xb8] sm:$0xff]
  %v44 = vld [vmem:[%s1 + $0xc0] sm:$0xff]
  %v45 = vld [vmem:[%s1 + $0xc8] sm:$0xff]
  %v46 = vld [vmem:[%s1 + $0xd0] sm:$0xff]
  %v47 = vld [vmem:[%s1 + $0xd8] sm:$0xff]
  %v48 = vld [vmem:[%s1 + $0xe0] sm:$0xff]
  %v49 = vld [vmem:[%s1 + $0xe8] sm:$0xff]
  %v50 = vld [vmem:[%s1 + $0xf0] sm:$0xff]
  %v51 = vld [vmem:[%s1 + $0xf8] sm:$0xff]
  %v54 = vunpack.c.l.b16 %v18
  %v55 = vunpack.c.l.b16 %v19
  %v56 = vpack.c.b16 %v55, %v54
  %v90 = vunpack.c.l.b16 %v20
  %v91 = vunpack.c.h.b16 %v20
  %v92 = vunpack.c.l.b16 %v21
  %v93 = vunpack.c.h.b16 %v21
  %v94 = vunpack.c.l.b16 %v22
  %v95 = vunpack.c.h.b16 %v22
  %v96 = vunpack.c.l.b16 %v23
  %v97 = vunpack.c.h.b16 %v23
  %v98 = vunpack.c.l.b16 %v24
  %v99 = vunpack.c.h.b16 %v24
  %v100 = vunpack.c.l.b16 %v25
  %v101 = vunpack.c.h.b16 %v25
  %v102 = vunpack.c.l.b16 %v26
  %v103 = vunpack.c.h.b16 %v26
  %v104 = vunpack.c.l.b16 %v27
  %v105 = vunpack.c.h.b16 %v27
  %v106 = vunpack.c.l.b16 %v28
  %v107 = vunpack.c.h.b16 %v28
  %v108 = vunpack.c.l.b16 %v29
  %v109 = vunpack.c.h.b16 %v29
  %v110 = vunpack.c.l.b16 %v30
  %v111 = vunpack.c.h.b16 %v30
  %v112 = vunpack.c.l.b16 %v31
  %v113 = vunpack.c.h.b16 %v31
  %v114 = vunpack.c.l.b16 %v32
  %v115 = vunpack.c.h.b16 %v32
  %v116 = vunpack.c.l.b16 %v33
  %v117 = vunpack.c.h.b16 %v33
  %v118 = vunpack.c.l.b16 %v34
  %v119 = vunpack.c.h.b16 %v34
  %v120 = vunpack.c.l.b16 %v35
  %v121 = vunpack.c.h.b16 %v35
  %v122 = vunpack.c.l.b16 %v36
  %v123 = vunpack.c.h.b16 %v36
  %v124 = vunpack.c.l.b16 %v37
  %v125 = vunpack.c.h.b16 %v37
  %v126 = vunpack.c.l.b16 %v38
  %v127 = vunpack.c.h.b16 %v38
  %v128 = vunpack.c.l.b16 %v39
  %v129 = vunpack.c.h.b16 %v39
  %v130 = vunpack.c.l.b16 %v40
  %v131 = vunpack.c.h.b16 %v40
  %v132 = vunpack.c.l.b16 %v41
  %v133 = vunpack.c.h.b16 %v41
  %v134 = vunpack.c.l.b16 %v42
  %v135 = vunpack.c.h.b16 %v42
  %v136 = vunpack.c.l.b16 %v43
  %v137 = vunpack.c.h.b16 %v43
  %v138 = vunpack.c.l.b16 %v44
  %v139 = vunpack.c.h.b16 %v44
  %v140 = vunpack.c.l.b16 %v45
  %v141 = vunpack.c.h.b16 %v45
  %v142 = vunpack.c.l.b16 %v46
  %v143 = vunpack.c.h.b16 %v46
  %v144 = vunpack.c.l.b16 %v47
  %v145 = vunpack.c.h.b16 %v47
  %v146 = vunpack.c.l.b16 %v48
  %v147 = vunpack.c.h.b16 %v48
  %v148 = vunpack.c.l.b16 %v49
  %v149 = vunpack.c.h.b16 %v49
  %v150 = vunpack.c.l.b16 %v50
  %v151 = vunpack.c.h.b16 %v50
  %v152 = vunpack.c.l.b16 %v51
  %v153 = vunpack.c.h.b16 %v51
  %v154 = vpack.c.b16 %v94, %v90
  %v155 = vpack.c.b16 %v95, %v91
  %v156 = vpack.c.b16 %v96, %v92
  %v157 = vpack.c.b16 %v97, %v93
  %v158 = vpack.c.b16 %v102, %v98
  %v159 = vpack.c.b16 %v103, %v99
  %v160 = vpack.c.b16 %v104, %v100
  %v161 = vpack.c.b16 %v105, %v101
  %v162 = vpack.c.b16 %v110, %v106
  %v163 = vpack.c.b16 %v111, %v107
  %v164 = vpack.c.b16 %v112, %v108
  %v165 = vpack.c.b16 %v113, %v109
  %v166 = vpack.c.b16 %v118, %v114
  %v167 = vpack.c.b16 %v119, %v115
  %v168 = vpack.c.b16 %v120, %v116
  %v169 = vpack.c.b16 %v121, %v117
  %v170 = vpack.c.b16 %v126, %v122
  %v171 = vpack.c.b16 %v127, %v123
  %v172 = vpack.c.b16 %v128, %v124
  %v173 = vpack.c.b16 %v129, %v125
  %v174 = vpack.c.b16 %v134, %v130
  %v175 = vpack.c.b16 %v135, %v131
  %v176 = vpack.c.b16 %v136, %v132
  %v177 = vpack.c.b16 %v137, %v133
  %v178 = vpack.c.b16 %v142, %v138
  %v179 = vpack.c.b16 %v143, %v139
  %v180 = vpack.c.b16 %v144, %v140
  %v181 = vpack.c.b16 %v145, %v141
  %v182 = vpack.c.b16 %v150, %v146
  %v183 = vpack.c.b16 %v151, %v147
  %v184 = vpack.c.b16 %v152, %v148
  %v185 = vpack.c.b16 %v153, %v149
  %218 = vmatprep.subr.bf16.mxu0 %v155
  %219 = vmatpush1.bf16.msra.mxu0 %v154
  %220 = vmatprep.subr.bf16.mxu0 %v159
  %221 = vmatpush1.bf16.msra.mxu0 %v158
  %222 = vmatprep.subr.bf16.mxu0 %v163
  %223 = vmatpush1.bf16.msra.mxu0 %v162
  %224 = vmatprep.subr.bf16.mxu0 %v167
  %225 = vmatpush1.bf16.msra.mxu0 %v166
  %226 = vmatprep.subr.bf16.mxu0 %v171
  %227 = vmatpush1.bf16.msra.mxu0 %v170
  %228 = vmatprep.subr.bf16.mxu0 %v175
  %229 = vmatpush1.bf16.msra.mxu0 %v174
  %230 = vmatprep.subr.bf16.mxu0 %v179
  %231 = vmatpush1.bf16.msra.mxu0 %v178
  %232 = vmatprep.subr.bf16.mxu0 %v183
  %233 = vmatpush1.bf16.msra.mxu0 %v182
  %234 = vmatprep.subr.bf16.mxu0 0
  %235 = vmatpush1.bf16.msra.mxu0 0
  %236 = vmatprep.subr.bf16.mxu0 0
  %237 = vmatpush1.bf16.msra.mxu0 0
  %238 = vmatprep.subr.bf16.mxu0 0
  %239 = vmatpush1.bf16.msra.mxu0 0
  %240 = vmatprep.subr.bf16.mxu0 0
  %241 = vmatpush1.bf16.msra.mxu0 0
  %242 = vmatprep.subr.bf16.mxu0 0
  %243 = vmatpush1.bf16.msra.mxu0 0
  %244 = vmatprep.subr.bf16.mxu0 0
  %245 = vmatpush1.bf16.msra.mxu0 0
  %246 = vmatprep.subr.bf16.mxu0 0
  %247 = vmatpush1.bf16.msra.mxu0 0
  %248 = vmatprep.subr.bf16.mxu0 0
  %249 = vmatpush1.bf16.msra.mxu0 0
  %250 = vmatprep.mubr.bf16.mxu0 0
  %251 = vmatmul.mubr.bf16.gmra.mrb[0].mxu0 %v56
  %v252 = vpop.f32.mrb[0].mxu0
  %v253 = vadd.f32 0.0, %v252
  %v254 = vpop.f32.mrb[0].mxu0
  %v255 = vadd.f32 0.0, %v254
  %v256 = vpop.f32.mrb[0].mxu0
  %v257 = vadd.f32 0.0, %v256
  %v258 = vpop.f32.mrb[0].mxu0
  %v259 = vadd.f32 0.0, %v258
  %260 = vdwg.mxu0
  %261 = vmatprep.subr.bf16.mxu0 %v157
  %262 = vmatpush1.bf16.msra.mxu0 %v156
  %263 = vmatprep.subr.bf16.mxu0 %v161
  %264 = vmatpush1.bf16.msra.mxu0 %v160
  %265 = vmatprep.subr.bf16.mxu0 %v165
  %266 = vmatpush1.bf16.msra.mxu0 %v164
  %267 = vmatprep.subr.bf16.mxu0 %v169
  %268 = vmatpush1.bf16.msra.mxu0 %v168
  %269 = vmatprep.subr.bf16.mxu0 %v173
  %270 = vmatpush1.bf16.msra.mxu0 %v172
  %271 = vmatprep.subr.bf16.mxu0 %v177
  %272 = vmatpush1.bf16.msra.mxu0 %v176
  %273 = vmatprep.subr.bf16.mxu0 %v181
  %274 = vmatpush1.bf16.msra.mxu0 %v180
  %275 = vmatprep.subr.bf16.mxu0 %v185
  %276 = vmatpush1.bf16.msra.mxu0 %v184
  %277 = vmatprep.subr.bf16.mxu0 0
  %278 = vmatpush1.bf16.msra.mxu0 0
  %279 = vmatprep.subr.bf16.mxu0 0
  %280 = vmatpush1.bf16.msra.mxu0 0
  %281 = vmatprep.subr.bf16.mxu0 0
  %282 = vmatpush1.bf16.msra.mxu0 0
  %283 = vmatprep.subr.bf16.mxu0 0
  %284 = vmatpush1.bf16.msra.mxu0 0
  %285 = vmatprep.subr.bf16.mxu0 0
  %286 = vmatpush1.bf16.msra.mxu0 0
  %287 = vmatprep.subr.bf16.mxu0 0
  %288 = vmatpush1.bf16.msra.mxu0 0
  %289 = vmatprep.subr.bf16.mxu0 0
  %290 = vmatpush1.bf16.msra.mxu0 0
  %291 = vmatprep.subr.bf16.mxu0 0
  %292 = vmatpush1.bf16.msra.mxu0 0
  %293 = vmatprep.mubr.bf16.mxu0 0
  %294 = vmatmul.mubr.bf16.gmra.mrb[0].mxu0 %v56
  %v295 = vpop.f32.mrb[0].mxu0
  %v296 = vadd.f32 0.0, %v295
  %v297 = vpop.f32.mrb[0].mxu0
  %v298 = vadd.f32 0.0, %v297
  %v299 = vpop.f32.mrb[0].mxu0
  %v300 = vadd.f32 0.0, %v299
  %v301 = vpop.f32.mrb[0].mxu0
  %v302 = vadd.f32 0.0, %v301
  %303 = vdwg.mxu0
  %v304 = vadd.f32 %v253, %v255
  %v305 = vadd.f32 %v304, %v296
  %v306 = vadd.f32 %v305, %v298
  %307 = vadd.xlane.f32.xlu0 %v306
  %v308 = vpop.xlane.xlu0 %307
  %v309 = vadd.f32 %v257, %v259
  %v310 = vadd.f32 %v309, %v300
  %v311 = vadd.f32 %v310, %v302
  %312 = vadd.xlane.f32.xlu0 %v311
  %v313 = vpop.xlane.xlu0 %312
  %v314 = vmul.f32 %v308, 0.001953125
  %v315 = vmul.f32 %v313, 0.001953125
  %v316 = vsub.f32 %v253, %v314
  %v317 = vsub.f32 %v255, %v314
  %v318 = vsub.f32 %v296, %v314
  %v319 = vsub.f32 %v298, %v314
  %v320 = vsub.f32 %v257, %v315
  %v321 = vsub.f32 %v259, %v315
  %v322 = vsub.f32 %v300, %v315
  %v323 = vsub.f32 %v302, %v315
  %v324 = vmul.f32 %v316, %v316
  %v325 = vmul.f32 %v317, %v317
  %v326 = vmul.f32 %v318, %v318
  %v327 = vmul.f32 %v319, %v319
  %v328 = vmul.f32 %v320, %v320
  %v329 = vmul.f32 %v321, %v321
  %v330 = vmul.f32 %v322, %v322
  %v331 = vmul.f32 %v323, %v323
  %v332 = vadd.f32 %v324, %v325
  %v333 = vadd.f32 %v332, %v326
  %v334 = vadd.f32 %v333, %v327
  %335 = vadd.xlane.f32.xlu0 %v334
  %v336 = vpop.xlane.xlu0 %335
  %v337 = vadd.f32 %v328, %v329
  %v338 = vadd.f32 %v337, %v330
  %v339 = vadd.f32 %v338, %v331
  %340 = vadd.xlane.f32.xlu0 %v339
  %v341 = vpop.xlane.xlu0 %340
  %v342 = vmul.f32 %v336, 0.001953125
  %v343 = vmul.f32 %v341, 0.001953125
  %v344 = vld [vmem:[%s2] sm:$0xff]
  %v345 = vld [vmem:[%s2 + $0x8] sm:$0xff]
  %v346 = vadd.f32 %v342, 1e-05
  %v347 = vadd.f32 %v343, 1e-05
  %v348 = vrsqrt.pop %v346
  %v349 = vrsqrt.pop %v347
  %v350 = vmul.f32 %v344, %v348
  %v351 = vmul.f32 %v345, %v349
  %353 = vset.pattern.permute.xlu0 0
  %354 = vperm.xlu0 %353, %v350
  %v355 = vpop.permute.xlu0 %354
  %358 = vset.pattern.permute.xlu0 0
  %359 = vperm.xlu0 %358, %v351
  %v360 = vpop.permute.xlu0 %359
  %v362 = vmul.f32 %v316, %v355
  %v363 = vmul.f32 %v317, %v355
  %v364 = vmul.f32 %v318, %v355
  %v365 = vmul.f32 %v319, %v355
  %v366 = vmul.f32 %v320, %v360
  %v367 = vmul.f32 %v321, %v360
  %v368 = vmul.f32 %v322, %v360
  %v369 = vmul.f32 %v323, %v360
  %v370 = vld [vmem:[%s3] sm:$0xff]
  %v371 = vld [vmem:[%s3 + $0x8] sm:$0xff]
  %373 = vset.pattern.permute.xlu0 0
  %374 = vperm.xlu0 %373, %v370
  %v375 = vpop.permute.xlu0 %374
  %378 = vset.pattern.permute.xlu0 0
  %379 = vperm.xlu0 %378, %v371
  %v380 = vpop.permute.xlu0 %379
  %v382 = vadd.f32 %v362, %v375
  %v383 = vadd.f32 %v363, %v375
  %v384 = vadd.f32 %v364, %v375
  %v385 = vadd.f32 %v365, %v375
  %v386 = vadd.f32 %v366, %v380
  %v387 = vadd.f32 %v367, %v380
  %v388 = vadd.f32 %v368, %v380
  %v389 = vadd.f32 %v369, %v380
  %v390 = vmul.f32 %v382, 0.2
  %v391 = vmul.f32 %v383, 0.2
  %v392 = vmul.f32 %v384, 0.2
  %v393 = vmul.f32 %v385, 0.2
  %v394 = vmul.f32 %v386, 0.2
  %v395 = vmul.f32 %v387, 0.2
  %v396 = vmul.f32 %v388, 0.2
  %v397 = vmul.f32 %v389, 0.2
  %v398 = vmax.f32 %v382, %v390
  %v399 = vmax.f32 %v383, %v391
  %v400 = vmax.f32 %v384, %v392
  %v401 = vmax.f32 %v385, %v393
  %v402 = vmax.f32 %v386, %v394
  %v403 = vmax.f32 %v387, %v395
  %v404 = vmax.f32 %v388, %v396
  %v405 = vmax.f32 %v389, %v397
  %v406 = vpack.c.bf16 %v402, %v398
  %v407 = vpack.c.bf16 %v403, %v399
  %v408 = vpack.c.bf16 %v404, %v400
  %v409 = vpack.c.bf16 %v405, %v401
  %v414 = vunpack.c.l.b16 %v406
  %v415 = vunpack.c.l.b16 %v407
  %v416 = vunpack.c.l.b16 %v408
  %v417 = vunpack.c.l.b16 %v409
  %v418 = vunpack.c.h.b16 %v406
  %v419 = vunpack.c.h.b16 %v407
  %v420 = vunpack.c.h.b16 %v408
  %v421 = vunpack.c.h.b16 %v409
  %v422 = vpack.c.b16 %v415, %v414
  %v423 = vpack.c.b16 %v417, %v416
  %v424 = vpack.c.b16 %v419, %v418
  %v425 = vpack.c.b16 %v421, %v420
  %430 = vst [vmem:[%s4] sm:$0xff] %v422
  %431 = vst [vmem:[%s4 + $0x8] sm:$0xff] %v423
  %432 = vst [vmem:[%s4 + $0x10] sm:$0xff] %v424
  %433 = vst [vmem:[%s4 + $0x18] sm:$0xff] %v425
  // Predicated region
  $region18: #{discriminator_forward.5} parent=0 // pred_check
    _
  $region19: #{discriminator_forward.5} parent=0 // pred_check_branch
    %435 = sbr.rel (0) target = $region21
  $region20: #{discriminator_forward.5} parent=0 // pred_region
    _
  $region21: #{discriminator_forward.5} parent=0 // pred_fallthru
    _
  // Predicated region
  $region22: #{discriminator_forward.5} parent=0 // pred_check
    _
  $region23: #{discriminator_forward.5} parent=0 // pred_check_branch
    %437 = sbr.rel (0) target = $region25
  $region24: #{discriminator_forward.5} parent=0 // pred_region
    _
  $region25: #{discriminator_forward.5} parent=0 // pred_fallthru
    _

// kernel: discriminator_forward.6
$region0: #{discriminator_forward.6}
  #allocation0 [shape = 'u32[]', space=smem, size = 0x4, offset = 0x4, fixed_abs, tag = 'smem constant byte address 0x4 - core index']
  #allocation1 [shape = 'u32[144,128]{1,0:T(1,128)}', space=vmem, size = 0x12000, scoped, tag = 'internal scratch']
  %s0 = inlined_call_operand.vmem [shape: bf16[32,256], index: 0, kind: input, shape index: {}]
  %s1 = inlined_call_operand.vmem [shape: bf16[256,128], index: 1, kind: input, shape index: {}]
  %s2 = inlined_call_operand.vmem [shape: f32[32,1], index: 2, kind: input, shape index: {}]
  %s3 = inlined_call_operand.vmem [shape: f32[32,1], index: 3, kind: input, shape index: {}]
  %s4 = inlined_call_operand.vmem [shape: bf16[32,128], index: 4, kind: output, shape index: {}]
  %s5 = sld [smem:[#allocation0]]
  $region26: #{discriminator_forward.6} parent=0
    _
  %s7 = ssub.s32 1, %s5
  %s8 = scalar_select 0, %s7, %s5
  // Predicated region
  $region2: #{discriminator_forward.6} parent=0 // pred_check
    _
  $region3: #{discriminator_forward.6} parent=0 // pred_check_branch
    %10 = sbr.rel (0) target = $region5
  $region4: #{discriminator_forward.6} parent=0 // pred_region
    _
  $region5: #{discriminator_forward.6} parent=0 // pred_fallthru
    _
  // Predicated region
  $region6: #{discriminator_forward.6} parent=0 // pred_check
    _
  $region7: #{discriminator_forward.6} parent=0 // pred_check_branch
    %12 = sbr.rel (0) target = $region9
  $region8: #{discriminator_forward.6} parent=0 // pred_region
    _
  $region9: #{discriminator_forward.6} parent=0 // pred_fallthru
    _
  // Predicated region
  $region10: #{discriminator_forward.6} parent=0 // pred_check
    _
  $region11: #{discriminator_forward.6} parent=0 // pred_check_branch
    %14 = sbr.rel (0) target = $region13
  $region12: #{discriminator_forward.6} parent=0 // pred_region
    _
  $region13: #{discriminator_forward.6} parent=0 // pred_fallthru
    _
  // Predicated region
  $region14: #{discriminator_forward.6} parent=0 // pred_check
    _
  $region15: #{discriminator_forward.6} parent=0 // pred_check_branch
    %16 = sbr.rel (0) target = $region17
  $region16: #{discriminator_forward.6} parent=0 // pred_region
    _
  $region17: #{discriminator_forward.6} parent=0 // pred_fallthru
    _
  %v18 = vld [vmem:[%s0] sm:$0xff]
  %v19 = vld [vmem:[%s0 + $0x8] sm:$0xff]
  %v20 = vld [vmem:[%s0 + $0x10] sm:$0xff]
  %v21 = vld [vmem:[%s0 + $0x18] sm:$0xff]
  %v22 = vld [vmem:[%s1] sm:$0xf]
  %v23 = vld [vmem:[%s1 + $0x4] sm:$0xf]
  %v24 = vld [vmem:[%s1 + $0x8] sm:$0xf]
  %v25 = vld [vmem:[%s1 + $0xc] sm:$0xf]
  %v26 = vld [vmem:[%s1 + $0x10] sm:$0xf]
  %v27 = vld [vmem:[%s1 + $0x14] sm:$0xf]
  %v28 = vld [vmem:[%s1 + $0x18] sm:$0xf]
  %v29 = vld [vmem:[%s1 + $0x1c] sm:$0xf]
  %v30 = vld [vmem:[%s1 + $0x20] sm:$0xf]
  %v31 = vld [vmem:[%s1 + $0x24] sm:$0xf]
  %v32 = vld [vmem:[%s1 + $0x28] sm:$0xf]
  %v33 = vld [vmem:[%s1 + $0x2c] sm:$0xf]
  %v34 = vld [vmem:[%s1 + $0x30] sm:$0xf]
  %v35 = vld [vmem:[%s1 + $0x34] sm:$0xf]
  %v36 = vld [vmem:[%s1 + $0x38] sm:$0xf]
  %v37 = vld [vmem:[%s1 + $0x3c] sm:$0xf]
  %v38 = vld [vmem:[%s1 + $0x40] sm:$0xf]
  %v39 = vld [vmem:[%s1 + $0x44] sm:$0xf]
  %v40 = vld [vmem:[%s1 + $0x48] sm:$0xf]
  %v41 = vld [vmem:[%s1 + $0x4c] sm:$0xf]
  %v42 = vld [vmem:[%s1 + $0x50] sm:$0xf]
  %v43 = vld [vmem:[%s1 + $0x54] sm:$0xf]
  %v44 = vld [vmem:[%s1 + $0x58] sm:$0xf]
  %v45 = vld [vmem:[%s1 + $0x5c] sm:$0xf]
  %v46 = vld [vmem:[%s1 + $0x60] sm:$0xf]
  %v47 = vld [vmem:[%s1 + $0x64] sm:$0xf]
  %v48 = vld [vmem:[%s1 + $0x68] sm:$0xf]
  %v49 = vld [vmem:[%s1 + $0x6c] sm:$0xf]
  %v50 = vld [vmem:[%s1 + $0x70] sm:$0xf]
  %v51 = vld [vmem:[%s1 + $0x74] sm:$0xf]
  %v52 = vld [vmem:[%s1 + $0x78] sm:$0xf]
  %v53 = vld [vmem:[%s1 + $0x7c] sm:$0xf]
  %v58 = vunpack.c.l.b16 %v18
  %v59 = vunpack.c.h.b16 %v18
  %v60 = vunpack.c.l.b16 %v19
  %v61 = vunpack.c.h.b16 %v19
  %v62 = vunpack.c.l.b16 %v20
  %v63 = vunpack.c.h.b16 %v20
  %v64 = vunpack.c.l.b16 %v21
  %v65 = vunpack.c.h.b16 %v21
  %v66 = vpack.c.b16 %v60, %v58
  %v67 = vpack.c.b16 %v61, %v59
  %v68 = vpack.c.b16 %v64, %v62
  %v69 = vpack.c.b16 %v65, %v63
  %v106 = vunpack.c.l.b16 %v22
  %v107 = vunpack.c.l.b16 %v23
  %v108 = vunpack.c.l.b16 %v24
  %v109 = vunpack.c.l.b16 %v25
  %v110 = vunpack.c.l.b16 %v26
  %v111 = vunpack.c.l.b16 %v27
  %v112 = vunpack.c.l.b16 %v28
  %v113 = vunpack.c.l.b16 %v29
  %v114 = vunpack.c.l.b16 %v30
  %v115 = vunpack.c.l.b16 %v31
  %v116 = vunpack.c.l.b16 %v32
  %v117 = vunpack.c.l.b16 %v33
  %v118 = vunpack.c.l.b16 %v34
  %v119 = vunpack.c.l.b16 %v35
  %v120 = vunpack.c.l.b16 %v36
  %v121 = vunpack.c.l.b16 %v37
  %v122 = vunpack.c.l.b16 %v38
  %v123 = vunpack.c.l.b16 %v39
  %v124 = vunpack.c.l.b16 %v40
  %v125 = vunpack.c.l.b16 %v41
  %v126 = vunpack.c.l.b16 %v42
  %v127 = vunpack.c.l.b16 %v43
  %v128 = vunpack.c.l.b16 %v44
  %v129 = vunpack.c.l.b16 %v45
  %v130 = vunpack.c.l.b16 %v46
  %v131 = vunpack.c.l.b16 %v47
  %v132 = vunpack.c.l.b16 %v48
  %v133 = vunpack.c.l.b16 %v49
  %v134 = vunpack.c.l.b16 %v50
  %v135 = vunpack.c.l.b16 %v51
  %v136 = vunpack.c.l.b16 %v52
  %v137 = vunpack.c.l.b16 %v53
  %v138 = vpack.c.b16 %v107, %v106
  %v139 = vpack.c.b16 %v109, %v108
  %v140 = vpack.c.b16 %v111, %v110
  %v141 = vpack.c.b16 %v113, %v112
  %v142 = vpack.c.b16 %v115, %v114
  %v143 = vpack.c.b16 %v117, %v116
  %v144 = vpack.c.b16 %v119, %v118
  %v145 = vpack.c.b16 %v121, %v120
  %v146 = vpack.c.b16 %v123, %v122
  %v147 = vpack.c.b16 %v125, %v124
  %v148 = vpack.c.b16 %v127, %v126
  %v149 = vpack.c.b16 %v129, %v128
  %v150 = vpack.c.b16 %v131, %v130
  %v151 = vpack.c.b16 %v133, %v132
  %v152 = vpack.c.b16 %v135, %v134
  %v153 = vpack.c.b16 %v137, %v136
  %170 = vmatprep.subr.bf16.mxu0 0
  %171 = vmatpush1.bf16.msra.mxu0 %v138
  %172 = vmatprep.subr.bf16.mxu0 0
  %173 = vmatpush1.bf16.msra.mxu0 %v139
  %174 = vmatprep.subr.bf16.mxu0 0
  %175 = vmatpush1.bf16.msra.mxu0 %v140
  %176 = vmatprep.subr.bf16.mxu0 0
  %177 = vmatpush1.bf16.msra.mxu0 %v141
  %178 = vmatprep.subr.bf16.mxu0 0
  %179 = vmatpush1.bf16.msra.mxu0 %v142
  %180 = vmatprep.subr.bf16.mxu0 0
  %181 = vmatpush1.bf16.msra.mxu0 %v143
  %182 = vmatprep.subr.bf16.mxu0 0
  %183 = vmatpush1.bf16.msra.mxu0 %v144
  %184 = vmatprep.subr.bf16.mxu0 0
  %185 = vmatpush1.bf16.msra.mxu0 %v145
  %186 = vmatprep.subr.bf16.mxu0 0
  %187 = vmatpush1.bf16.msra.mxu0 %v146
  %188 = vmatprep.subr.bf16.mxu0 0
  %189 = vmatpush1.bf16.msra.mxu0 %v147
  %190 = vmatprep.subr.bf16.mxu0 0
  %191 = vmatpush1.bf16.msra.mxu0 %v148
  %192 = vmatprep.subr.bf16.mxu0 0
  %193 = vmatpush1.bf16.msra.mxu0 %v149
  %194 = vmatprep.subr.bf16.mxu0 0
  %195 = vmatpush1.bf16.msra.mxu0 %v150
  %196 = vmatprep.subr.bf16.mxu0 0
  %197 = vmatpush1.bf16.msra.mxu0 %v151
  %198 = vmatprep.subr.bf16.mxu0 0
  %199 = vmatpush1.bf16.msra.mxu0 %v152
  %200 = vmatprep.subr.bf16.mxu0 0
  %201 = vmatpush1.bf16.msra.mxu0 %v153
  %202 = vmatprep.mubr.bf16.mxu0 %v67
  %203 = vmatmul.mubr.bf16.gmra.mrb[0].mxu0 %v66
  %v204 = vpop.f32.mrb[0].mxu0
  %v205 = vadd.f32 0.0, %v204
  %v206 = vpop.f32.mrb[0].mxu0
  %v207 = vpop.f32.mrb[0].mxu0
  %v208 = vadd.f32 0.0, %v207
  %v209 = vpop.f32.mrb[0].mxu0
  %210 = vmatprep.mubr.bf16.mxu0 %v69
  %211 = vmatmul.mubr.bf16.gmra.mrb[0].mxu0 %v68
  %v212 = vpop.f32.mrb[0].mxu0
  %v213 = vadd.f32 0.0, %v212
  %v214 = vpop.f32.mrb[0].mxu0
  %v215 = vpop.f32.mrb[0].mxu0
  %v216 = vadd.f32 0.0, %v215
  %v217 = vpop.f32.mrb[0].mxu0
  %218 = vdwg.mxu0
  %219 = vadd.xlane.f32.xlu0 %v205
  %v220 = vpop.xlane.xlu0 %219
  %221 = vadd.xlane.f32.xlu0 %v208
  %v222 = vpop.xlane.xlu0 %221
  %223 = vadd.xlane.f32.xlu0 %v213
  %v224 = vpop.xlane.xlu0 %223
  %225 = vadd.xlane.f32.xlu0 %v216
  %v226 = vpop.xlane.xlu0 %225
  %v227 = vmul.f32 %v220, 0.0078125
  %v228 = vmul.f32 %v222, 0.0078125
  %v229 = vmul.f32 %v224, 0.0078125
  %v230 = vmul.f32 %v226, 0.0078125
  %v231 = vsub.f32 %v205, %v227
  %v232 = vsub.f32 %v208, %v228
  %v233 = vsub.f32 %v213, %v229
  %v234 = vsub.f32 %v216, %v230
  %v235 = vmul.f32 %v231, %v231
  %v236 = vmul.f32 %v232, %v232
  %v237 = vmul.f32 %v233, %v233
  %v238 = vmul.f32 %v234, %v234
  %239 = vadd.xlane.f32.xlu0 %v235
  %v240 = vpop.xlane.xlu0 %239
  %241 = vadd.xlane.f32.xlu0 %v236
  %v242 = vpop.xlane.xlu0 %241
  %243 = vadd.xlane.f32.xlu0 %v237
  %v244 = vpop.xlane.xlu0 %243
  %245 = vadd.xlane.f32.xlu0 %v238
  %v246 = vpop.xlane.xlu0 %245
  %v247 = vmul.f32 %v240, 0.0078125
  %v248 = vmul.f32 %v242, 0.0078125
  %v249 = vmul.f32 %v244, 0.0078125
  %v250 = vmul.f32 %v246, 0.0078125
  %v251 = vld [vmem:[%s2] sm:$0xff]
  %v252 = vld [vmem:[%s2 + $0x8] sm:$0xff]
  %v253 = vld [vmem:[%s2 + $0x10] sm:$0xff]
  %v254 = vld [vmem:[%s2 + $0x18] sm:$0xff]
  %v255 = vadd.f32 %v247, 1e-05
  %v256 = vadd.f32 %v248, 1e-05
  %v257 = vadd.f32 %v249, 1e-05
  %v258 = vadd.f32 %v250, 1e-05
  %v259 = vrsqrt.pop %v255
  %v260 = vrsqrt.pop %v256
  %v261 = vrsqrt.pop %v257
  %v262 = vrsqrt.pop %v258
  %v263 = vmul.f32 %v251, %v259
  %v264 = vmul.f32 %v252, %v260
  %v265 = vmul.f32 %v253, %v261
  %v266 = vmul.f32 %v254, %v262
  %268 = vset.pattern.permute.xlu0 0
  %269 = vperm.xlu0 %268, %v263
  %v270 = vpop.permute.xlu0 %269
  %273 = vset.pattern.permute.xlu0 0
  %274 = vperm.xlu0 %273, %v264
  %v275 = vpop.permute.xlu0 %274
  %278 = vset.pattern.permute.xlu0 0
  %279 = vperm.xlu0 %278, %v265
  %v280 = vpop.permute.xlu0 %279
  %283 = vset.pattern.permute.xlu0 0
  %284 = vperm.xlu0 %283, %v266
  %v285 = vpop.permute.xlu0 %284
  %v287 = vmul.f32 %v231, %v270
  %v288 = vmul.f32 %v232, %v275
  %v289 = vmul.f32 %v233, %v280
  %v290 = vmul.f32 %v234, %v285
  %v291 = vld [vmem:[%s3] sm:$0xff]
  %v292 = vld [vmem:[%s3 + $0x8] sm:$0xff]
  %v293 = vld [vmem:[%s3 + $0x10] sm:$0xff]
  %v294 = vld [vmem:[%s3 + $0x18] sm:$0xff]
  %296 = vset.pattern.permute.xlu0 0
  %297 = vperm.xlu0 %296, %v291
  %v298 = vpop.permute.xlu0 %297
  %301 = vset.pattern.permute.xlu0 0
  %302 = vperm.xlu0 %301, %v292
  %v303 = vpop.permute.xlu0 %302
  %306 = vset.pattern.permute.xlu0 0
  %307 = vperm.xlu0 %306, %v293
  %v308 = vpop.permute.xlu0 %307
  %311 = vset.pattern.permute.xlu0 0
  %312 = vperm.xlu0 %311, %v294
  %v313 = vpop.permute.xlu0 %312
  %v315 = vadd.f32 %v287, %v298
  %v316 = vadd.f32 %v288, %v303
  %v317 = vadd.f32 %v289, %v308
  %v318 = vadd.f32 %v290, %v313
  %v319 = vmul.f32 %v315, 0.2
  %v320 = vmul.f32 %v316, 0.2
  %v321 = vmul.f32 %v317, 0.2
  %v322 = vmul.f32 %v318, 0.2
  %v323 = vmax.f32 %v315, %v319
  %v324 = vmax.f32 %v316, %v320
  %v325 = vmax.f32 %v317, %v321
  %v326 = vmax.f32 %v318, %v322
  %v327 = vpack.c.bf16 %v324, %v323
  %v328 = vpack.c.bf16 %v326, %v325
  %v331 = vunpack.c.l.b16 %v327
  %v332 = vunpack.c.h.b16 %v327
  %v333 = vunpack.c.l.b16 %v328
  %v334 = vunpack.c.h.b16 %v328
  %v335 = vpack.c.b16 %v331, %v331
  %v336 = vpack.c.b16 %v332, %v332
  %v337 = vpack.c.b16 %v333, %v333
  %v338 = vpack.c.b16 %v334, %v334
  %343 = vst [vmem:[%s4] sm:$0xf] %v335
  %344 = vst [vmem:[%s4 + $0x4] sm:$0xf] %v336
  %345 = vst [vmem:[%s4 + $0x8] sm:$0xf] %v337
  %346 = vst [vmem:[%s4 + $0xc] sm:$0xf] %v338
  // Predicated region
  $region18: #{discriminator_forward.6} parent=0 // pred_check
    _
  $region19: #{discriminator_forward.6} parent=0 // pred_check_branch
    %348 = sbr.rel (0) target = $region21
  $region20: #{discriminator_forward.6} parent=0 // pred_region
    _
  $region21: #{discriminator_forward.6} parent=0 // pred_fallthru
    _
  // Predicated region
  $region22: #{discriminator_forward.6} parent=0 // pred_check
    _
  $region23: #{discriminator_forward.6} parent=0 // pred_check_branch
    %350 = sbr.rel (0) target = $region25
  $region24: #{discriminator_forward.6} parent=0 // pred_region
    _
  $region25: #{discriminator_forward.6} parent=0 // pred_fallthru
    _

// kernel: discriminator_forward.7
$region0: #{discriminator_forward.7}
  #allocation0 [shape = 'u32[]', space=smem, size = 0x4, offset = 0x4, fixed_abs, tag = 'smem constant byte address 0x4 - core index']
  #allocation1 [shape = 'u32[144,128]{1,0:T(1,128)}', space=vmem, size = 0x12000, scoped, tag = 'internal scratch']
  %s0 = inlined_call_operand.vmem [shape: bf16[64,512], index: 0, kind: input, shape index: {}]
  %s1 = inlined_call_operand.vmem [shape: bf16[512,32], index: 1, kind: input, shape index: {}]
  %s2 = inlined_call_operand.vmem [shape: f32[64,1], index: 2, kind: input, shape index: {}]
  %s3 = inlined_call_operand.vmem [shape: f32[64,1], index: 3, kind: input, shape index: {}]
  %s4 = inlined_call_operand.vmem [shape: f32[64,32], index: 4, kind: input, shape index: {}]
  %s5 = inlined_call_operand.vmem [shape: f32[32,2], index: 5, kind: input, shape index: {}]
  %s6 = inlined_call_operand.hbm [shape: f32[1,2], index: 6, kind: output, shape index: {}]
  %s7 = sld [smem:[#allocation0]]
  $region34: #{discriminator_forward.7} parent=0
    _
  %s9 = ssub.s32 1, %s7
  %s10 = scalar_select 0, %s9, %s7
  $region1: #{discriminator_forward.7} parent=0
    #allocation2 [shape = 'u8[512]{0}', space=vmem, size = 0x400, scoped, tag = 'output window, operand 0, single buffered']
    #allocation3 [shape = 's32[1]{0}', space=sflag, size = 0x4, scoped, tag = 'scoped memory for discriminator_forward.7']
    %11 = vsyncpa [#allocation3], 0
    // Predicated region
    $region2: #{discriminator_forward.7} parent=1 // pred_check
      _
    $region3: #{discriminator_forward.7} parent=1 // pred_check_branch
      %13 = sbr.rel (0) target = $region5
    $region4: #{discriminator_forward.7} parent=1 // pred_region
      _
    $region5: #{discriminator_forward.7} parent=1 // pred_fallthru
      _
    // Predicated region
    $region6: #{discriminator_forward.7} parent=1 // pred_check
      _
    $region7: #{discriminator_forward.7} parent=1 // pred_check_branch
      %15 = sbr.rel (0) target = $region9
    $region8: #{discriminator_forward.7} parent=1 // pred_region
      _
    $region9: #{discriminator_forward.7} parent=1 // pred_fallthru
      _
    // Predicated region
    $region10: #{discriminator_forward.7} parent=1 // pred_check
      _
    $region11: #{discriminator_forward.7} parent=1 // pred_check_branch
      %17 = sbr.rel (0) target = $region13
    $region12: #{discriminator_forward.7} parent=1 // pred_region
      _
    $region13: #{discriminator_forward.7} parent=1 // pred_fallthru
      _
    // Predicated region
    $region14: #{discriminator_forward.7} parent=1 // pred_check
      _
    $region15: #{discriminator_forward.7} parent=1 // pred_check_branch
      %19 = sbr.rel (0) target = $region17
    $region16: #{discriminator_forward.7} parent=1 // pred_region
      _
    $region17: #{discriminator_forward.7} parent=1 // pred_fallthru
      _
    // Predicated region
    $region18: #{discriminator_forward.7} parent=1 // pred_check
      _
    $region19: #{discriminator_forward.7} parent=1 // pred_check_branch
      %21 = sbr.rel (0) target = $region21
    $region20: #{discriminator_forward.7} parent=1 // pred_region
      _
    $region21: #{discriminator_forward.7} parent=1 // pred_fallthru
      _
    // Predicated region
    $region22: #{discriminator_forward.7} parent=1 // pred_check
      _
    $region23: #{discriminator_forward.7} parent=1 // pred_check_branch
      %23 = sbr.rel (0) target = $region25
    $region24: #{discriminator_forward.7} parent=1 // pred_region
      _
    $region25: #{discriminator_forward.7} parent=1 // pred_fallthru
      _
    %v25 = vld [vmem:[%s0] sm:$0xff]
    %v26 = vld [vmem:[%s0 + $0x8] sm:$0xff]
    %v27 = vld [vmem:[%s0 + $0x10] sm:$0xff]
    %v28 = vld [vmem:[%s0 + $0x18] sm:$0xff]
    %v29 = vld [vmem:[%s0 + $0x20] sm:$0xff]
    %v30 = vld [vmem:[%s0 + $0x28] sm:$0xff]
    %v31 = vld [vmem:[%s0 + $0x30] sm:$0xff]
    %v32 = vld [vmem:[%s0 + $0x38] sm:$0xff]
    %v33 = vld [vmem:[%s0 + $0x40] sm:$0xff]
    %v34 = vld [vmem:[%s0 + $0x48] sm:$0xff]
    %v35 = vld [vmem:[%s0 + $0x50] sm:$0xff]
    %v36 = vld [vmem:[%s0 + $0x58] sm:$0xff]
    %v37 = vld [vmem:[%s0 + $0x60] sm:$0xff]
    %v38 = vld [vmem:[%s0 + $0x68] sm:$0xff]
    %v39 = vld [vmem:[%s0 + $0x70] sm:$0xff]
    %v40 = vld [vmem:[%s0 + $0x78] sm:$0xff]
    %v41 = vld [vmem:[%s1] sm:$0xf]
    %v42 = vld [vmem:[%s1 + $0x4] sm:$0xf]
    %v43 = vld [vmem:[%s1 + $0x8] sm:$0xf]
    %v44 = vld [vmem:[%s1 + $0xc] sm:$0xf]
    %v45 = vld [vmem:[%s1 + $0x10] sm:$0xf]
    %v46 = vld [vmem:[%s1 + $0x14] sm:$0xf]
    %v47 = vld [vmem:[%s1 + $0x18] sm:$0xf]
    %v48 = vld [vmem:[%s1 + $0x1c] sm:$0xf]
    %v49 = vld [vmem:[%s1 + $0x20] sm:$0xf]
    %v50 = vld [vmem:[%s1 + $0x24] sm:$0xf]
    %v51 = vld [vmem:[%s1 + $0x28] sm:$0xf]
    %v52 = vld [vmem:[%s1 + $0x2c] sm:$0xf]
    %v53 = vld [vmem:[%s1 + $0x30] sm:$0xf]
    %v54 = vld [vmem:[%s1 + $0x34] sm:$0xf]
    %v55 = vld [vmem:[%s1 + $0x38] sm:$0xf]
    %v56 = vld [vmem:[%s1 + $0x3c] sm:$0xf]
    %v57 = vld [vmem:[%s1 + $0x40] sm:$0xf]
    %v58 = vld [vmem:[%s1 + $0x44] sm:$0xf]
    %v59 = vld [vmem:[%s1 + $0x48] sm:$0xf]
    %v60 = vld [vmem:[%s1 + $0x4c] sm:$0xf]
    %v61 = vld [vmem:[%s1 + $0x50] sm:$0xf]
    %v62 = vld [vmem:[%s1 + $0x54] sm:$0xf]
    %v63 = vld [vmem:[%s1 + $0x58] sm:$0xf]
    %v64 = vld [vmem:[%s1 + $0x5c] sm:$0xf]
    %v65 = vld [vmem:[%s1 + $0x60] sm:$0xf]
    %v66 = vld [vmem:[%s1 + $0x64] sm:$0xf]
    %v67 = vld [vmem:[%s1 + $0x68] sm:$0xf]
    %v68 = vld [vmem:[%s1 + $0x6c] sm:$0xf]
    %v69 = vld [vmem:[%s1 + $0x70] sm:$0xf]
    %v70 = vld [vmem:[%s1 + $0x74] sm:$0xf]
    %v71 = vld [vmem:[%s1 + $0x78] sm:$0xf]
    %v72 = vld [vmem:[%s1 + $0x7c] sm:$0xf]
    %v73 = vld [vmem:[%s1 + $0x80] sm:$0xf]
    %v74 = vld [vmem:[%s1 + $0x84] sm:$0xf]
    %v75 = vld [vmem:[%s1 + $0x88] sm:$0xf]
    %v76 = vld [vmem:[%s1 + $0x8c] sm:$0xf]
    %v77 = vld [vmem:[%s1 + $0x90] sm:$0xf]
    %v78 = vld [vmem:[%s1 + $0x94] sm:$0xf]
    %v79 = vld [vmem:[%s1 + $0x98] sm:$0xf]
    %v80 = vld [vmem:[%s1 + $0x9c] sm:$0xf]
    %v81 = vld [vmem:[%s1 + $0xa0] sm:$0xf]
    %v82 = vld [vmem:[%s1 + $0xa4] sm:$0xf]
    %v83 = vld [vmem:[%s1 + $0xa8] sm:$0xf]
    %v84 = vld [vmem:[%s1 + $0xac] sm:$0xf]
    %v85 = vld [vmem:[%s1 + $0xb0] sm:$0xf]
    %v86 = vld [vmem:[%s1 + $0xb4] sm:$0xf]
    %v87 = vld [vmem:[%s1 + $0xb8] sm:$0xf]
    %v88 = vld [vmem:[%s1 + $0xbc] sm:$0xf]
    %v89 = vld [vmem:[%s1 + $0xc0] sm:$0xf]
    %v90 = vld [vmem:[%s1 + $0xc4] sm:$0xf]
    %v91 = vld [vmem:[%s1 + $0xc8] sm:$0xf]
    %v92 = vld [vmem:[%s1 + $0xcc] sm:$0xf]
    %v93 = vld [vmem:[%s1 + $0xd0] sm:$0xf]
    %v94 = vld [vmem:[%s1 + $0xd4] sm:$0xf]
    %v95 = vld [vmem:[%s1 + $0xd8] sm:$0xf]
    %v96 = vld [vmem:[%s1 + $0xdc] sm:$0xf]
    %v97 = vld [vmem:[%s1 + $0xe0] sm:$0xf]
    %v98 = vld [vmem:[%s1 + $0xe4] sm:$0xf]
    %v99 = vld [vmem:[%s1 + $0xe8] sm:$0xf]
    %v100 = vld [vmem:[%s1 + $0xec] sm:$0xf]
    %v101 = vld [vmem:[%s1 + $0xf0] sm:$0xf]
    %v102 = vld [vmem:[%s1 + $0xf4] sm:$0xf]
    %v103 = vld [vmem:[%s1 + $0xf8] sm:$0xf]
    %v104 = vld [vmem:[%s1 + $0xfc] sm:$0xf]
    %v121 = vunpack.c.l.b16 %v25
    %v122 = vunpack.c.h.b16 %v25
    %v123 = vunpack.c.l.b16 %v26
    %v124 = vunpack.c.h.b16 %v26
    %v125 = vunpack.c.l.b16 %v27
    %v126 = vunpack.c.h.b16 %v27
    %v127 = vunpack.c.l.b16 %v28
    %v128 = vunpack.c.h.b16 %v28
    %v129 = vunpack.c.l.b16 %v29
    %v130 = vunpack.c.h.b16 %v29
    %v131 = vunpack.c.l.b16 %v30
    %v132 = vunpack.c.h.b16 %v30
    %v133 = vunpack.c.l.b16 %v31
    %v134 = vunpack.c.h.b16 %v31
    %v135 = vunpack.c.l.b16 %v32
    %v136 = vunpack.c.h.b16 %v32
    %v137 = vunpack.c.l.b16 %v33
    %v138 = vunpack.c.h.b16 %v33
    %v139 = vunpack.c.l.b16 %v34
    %v140 = vunpack.c.h.b16 %v34
    %v141 = vunpack.c.l.b16 %v35
    %v142 = vunpack.c.h.b16 %v35
    %v143 = vunpack.c.l.b16 %v36
    %v144 = vunpack.c.h.b16 %v36
    %v145 = vunpack.c.l.b16 %v37
    %v146 = vunpack.c.h.b16 %v37
    %v147 = vunpack.c.l.b16 %v38
    %v148 = vunpack.c.h.b16 %v38
    %v149 = vunpack.c.l.b16 %v39
    %v150 = vunpack.c.h.b16 %v39
    %v151 = vunpack.c.l.b16 %v40
    %v152 = vunpack.c.h.b16 %v40
    %v153 = vpack.c.b16 %v125, %v121
    %v154 = vpack.c.b16 %v126, %v122
    %v155 = vpack.c.b16 %v127, %v123
    %v156 = vpack.c.b16 %v128, %v124
    %v157 = vpack.c.b16 %v133, %v129
    %v158 = vpack.c.b16 %v134, %v130
    %v159 = vpack.c.b16 %v135, %v131
    %v160 = vpack.c.b16 %v136, %v132
    %v161 = vpack.c.b16 %v141, %v137
    %v162 = vpack.c.b16 %v142, %v138
    %v163 = vpack.c.b16 %v143, %v139
    %v164 = vpack.c.b16 %v144, %v140
    %v165 = vpack.c.b16 %v149, %v145
    %v166 = vpack.c.b16 %v150, %v146
    %v167 = vpack.c.b16 %v151, %v147
    %v168 = vpack.c.b16 %v152, %v148
    %v249 = vunpack.c.l.b16 %v41
    %v250 = vunpack.c.l.b16 %v42
    %v251 = vunpack.c.l.b16 %v43
    %v252 = vunpack.c.l.b16 %v44
    %v253 = vunpack.c.l.b16 %v45
    %v254 = vunpack.c.l.b16 %v46
    %v255 = vunpack.c.l.b16 %v47
    %v256 = vunpack.c.l.b16 %v48
    %v257 = vunpack.c.l.b16 %v49
    %v258 = vunpack.c.l.b16 %v50
    %v259 = vunpack.c.l.b16 %v51
    %v260 = vunpack.c.l.b16 %v52
    %v261 = vunpack.c.l.b16 %v53
    %v262 = vunpack.c.l.b16 %v54
    %v263 = vunpack.c.l.b16 %v55
    %v264 = vunpack.c.l.b16 %v56
    %v265 = vunpack.c.l.b16 %v57
    %v266 = vunpack.c.l.b16 %v58
    %v267 = vunpack.c.l.b16 %v59
    %v268 = vunpack.c.l.b16 %v60
    %v269 = vunpack.c.l.b16 %v61
    %v270 = vunpack.c.l.b16 %v62
    %v271 = vunpack.c.l.b16 %v63
    %v272 = vunpack.c.l.b16 %v64
    %v273 = vunpack.c.l.b16 %v65
    %v274 = vunpack.c.l.b16 %v66
    %v275 = vunpack.c.l.b16 %v67
    %v276 = vunpack.c.l.b16 %v68
    %v277 = vunpack.c.l.b16 %v69
    %v278 = vunpack.c.l.b16 %v70
    %v279 = vunpack.c.l.b16 %v71
    %v280 = vunpack.c.l.b16 %v72
    %v281 = vunpack.c.l.b16 %v73
    %v282 = vunpack.c.l.b16 %v74
    %v283 = vunpack.c.l.b16 %v75
    %v284 = vunpack.c.l.b16 %v76
    %v285 = vunpack.c.l.b16 %v77
    %v286 = vunpack.c.l.b16 %v78
    %v287 = vunpack.c.l.b16 %v79
    %v288 = vunpack.c.l.b16 %v80
    %v289 = vunpack.c.l.b16 %v81
    %v290 = vunpack.c.l.b16 %v82
    %v291 = vunpack.c.l.b16 %v83
    %v292 = vunpack.c.l.b16 %v84
    %v293 = vunpack.c.l.b16 %v85
    %v294 = vunpack.c.l.b16 %v86
    %v295 = vunpack.c.l.b16 %v87
    %v296 = vunpack.c.l.b16 %v88
    %v297 = vunpack.c.l.b16 %v89
    %v298 = vunpack.c.l.b16 %v90
    %v299 = vunpack.c.l.b16 %v91
    %v300 = vunpack.c.l.b16 %v92
    %v301 = vunpack.c.l.b16 %v93
    %v302 = vunpack.c.l.b16 %v94
    %v303 = vunpack.c.l.b16 %v95
    %v304 = vunpack.c.l.b16 %v96
    %v305 = vunpack.c.l.b16 %v97
    %v306 = vunpack.c.l.b16 %v98
    %v307 = vunpack.c.l.b16 %v99
    %v308 = vunpack.c.l.b16 %v100
    %v309 = vunpack.c.l.b16 %v101
    %v310 = vunpack.c.l.b16 %v102
    %v311 = vunpack.c.l.b16 %v103
    %v312 = vunpack.c.l.b16 %v104
    %v313 = vpack.c.b16 %v250, %v249
    %v314 = vpack.c.b16 %v252, %v251
    %v315 = vpack.c.b16 %v254, %v253
    %v316 = vpack.c.b16 %v256, %v255
    %v317 = vpack.c.b16 %v258, %v257
    %v318 = vpack.c.b16 %v260, %v259
    %v319 = vpack.c.b16 %v262, %v261
    %v320 = vpack.c.b16 %v264, %v263
    %v321 = vpack.c.b16 %v266, %v265
    %v322 = vpack.c.b16 %v268, %v267
    %v323 = vpack.c.b16 %v270, %v269
    %v324 = vpack.c.b16 %v272, %v271
    %v325 = vpack.c.b16 %v274, %v273
    %v326 = vpack.c.b16 %v276, %v275
    %v327 = vpack.c.b16 %v278, %v277
    %v328 = vpack.c.b16 %v280, %v279
    %v329 = vpack.c.b16 %v282, %v281
    %v330 = vpack.c.b16 %v284, %v283
    %v331 = vpack.c.b16 %v286, %v285
    %v332 = vpack.c.b16 %v288, %v287
    %v333 = vpack.c.b16 %v290, %v289
    %v334 = vpack.c.b16 %v292, %v291
    %v335 = vpack.c.b16 %v294, %v293
    %v336 = vpack.c.b16 %v296, %v295
    %v337 = vpack.c.b16 %v298, %v297
    %v338 = vpack.c.b16 %v300, %v299
    %v339 = vpack.c.b16 %v302, %v301
    %v340 = vpack.c.b16 %v304, %v303
    %v341 = vpack.c.b16 %v306, %v305
    %v342 = vpack.c.b16 %v308, %v307
    %v343 = vpack.c.b16 %v310, %v309
    %v344 = vpack.c.b16 %v312, %v311
    %377 = vmatprep.subr.bf16.mxu0 0
    %378 = vmatpush1.bf16.msra.mxu0 %v313
    %379 = vmatprep.subr.bf16.mxu0 0
    %380 = vmatpush1.bf16.msra.mxu0 %v314
    %381 = vmatprep.subr.bf16.mxu0 0
    %382 = vmatpush1.bf16.msra.mxu0 %v315
    %383 = vmatprep.subr.bf16.mxu0 0
    %384 = vmatpush1.bf16.msra.mxu0 %v316
    %385 = vmatprep.subr.bf16.mxu0 0
    %386 = vmatpush1.bf16.msra.mxu0 %v317
    %387 = vmatprep.subr.bf16.mxu0 0
    %388 = vmatpush1.bf16.msra.mxu0 %v318
    %389 = vmatprep.subr.bf16.mxu0 0
    %390 = vmatpush1.bf16.msra.mxu0 %v319
    %391 = vmatprep.subr.bf16.mxu0 0
    %392 = vmatpush1.bf16.msra.mxu0 %v320
    %393 = vmatprep.subr.bf16.mxu0 0
    %394 = vmatpush1.bf16.msra.mxu0 %v321
    %395 = vmatprep.subr.bf16.mxu0 0
    %396 = vmatpush1.bf16.msra.mxu0 %v322
    %397 = vmatprep.subr.bf16.mxu0 0
    %398 = vmatpush1.bf16.msra.mxu0 %v323
    %399 = vmatprep.subr.bf16.mxu0 0
    %400 = vmatpush1.bf16.msra.mxu0 %v324
    %401 = vmatprep.subr.bf16.mxu0 0
    %402 = vmatpush1.bf16.msra.mxu0 %v325
    %403 = vmatprep.subr.bf16.mxu0 0
    %404 = vmatpush1.bf16.msra.mxu0 %v326
    %405 = vmatprep.subr.bf16.mxu0 0
    %406 = vmatpush1.bf16.msra.mxu0 %v327
    %407 = vmatprep.subr.bf16.mxu0 0
    %408 = vmatpush1.bf16.msra.mxu0 %v328
    %409 = vmatprep.mubr.bf16.mxu0 %v154
    %410 = vmatmul.mubr.bf16.gmra.mrb[0].mxu0 %v153
    %v411 = vpop.f32.mrb[0].mxu0
    %v412 = vadd.f32 0.0, %v411
    %v413 = vpop.f32.mrb[0].mxu0
    %v414 = vpop.f32.mrb[0].mxu0
    %v415 = vadd.f32 0.0, %v414
    %v416 = vpop.f32.mrb[0].mxu0
    %417 = vmatprep.mubr.bf16.mxu0 %v158
    %418 = vmatmul.mubr.bf16.gmra.mrb[0].mxu0 %v157
    %v419 = vpop.f32.mrb[0].mxu0
    %v420 = vadd.f32 0.0, %v419
    %v421 = vpop.f32.mrb[0].mxu0
    %v422 = vpop.f32.mrb[0].mxu0
    %v423 = vadd.f32 0.0, %v422
    %v424 = vpop.f32.mrb[0].mxu0
    %425 = vmatprep.mubr.bf16.mxu0 %v162
    %426 = vmatmul.mubr.bf16.gmra.mrb[0].mxu0 %v161
    %v427 = vpop.f32.mrb[0].mxu0
    %v428 = vadd.f32 0.0, %v427
    %v429 = vpop.f32.mrb[0].mxu0
    %v430 = vpop.f32.mrb[0].mxu0
    %v431 = vadd.f32 0.0, %v430
    %v432 = vpop.f32.mrb[0].mxu0
    %433 = vmatprep.mubr.bf16.mxu0 %v166
    %434 = vmatmul.mubr.bf16.gmra.mrb[0].mxu0 %v165
    %v435 = vpop.f32.mrb[0].mxu0
    %v436 = vadd.f32 0.0, %v435
    %v437 = vpop.f32.mrb[0].mxu0
    %v438 = vpop.f32.mrb[0].mxu0
    %v439 = vadd.f32 0.0, %v438
    %v440 = vpop.f32.mrb[0].mxu0
    %441 = vdwg.mxu0
    %442 = vmatprep.subr.bf16.mxu0 0
    %443 = vmatpush1.bf16.msra.mxu0 %v329
    %444 = vmatprep.subr.bf16.mxu0 0
    %445 = vmatpush1.bf16.msra.mxu0 %v330
    %446 = vmatprep.subr.bf16.mxu0 0
    %447 = vmatpush1.bf16.msra.mxu0 %v331
    %448 = vmatprep.subr.bf16.mxu0 0
    %449 = vmatpush1.bf16.msra.mxu0 %v332
    %450 = vmatprep.subr.bf16.mxu0 0
    %451 = vmatpush1.bf16.msra.mxu0 %v333
    %452 = vmatprep.subr.bf16.mxu0 0
    %453 = vmatpush1.bf16.msra.mxu0 %v334
    %454 = vmatprep.subr.bf16.mxu0 0
    %455 = vmatpush1.bf16.msra.mxu0 %v335
    %456 = vmatprep.subr.bf16.mxu0 0
    %457 = vmatpush1.bf16.msra.mxu0 %v336
    %458 = vmatprep.subr.bf16.mxu0 0
    %459 = vmatpush1.bf16.msra.mxu0 %v337
    %460 = vmatprep.subr.bf16.mxu0 0
    %461 = vmatpush1.bf16.msra.mxu0 %v338
    %462 = vmatprep.subr.bf16.mxu0 0
    %463 = vmatpush1.bf16.msra.mxu0 %v339
    %464 = vmatprep.subr.bf16.mxu0 0
    %465 = vmatpush1.bf16.msra.mxu0 %v340
    %466 = vmatprep.subr.bf16.mxu0 0
    %467 = vmatpush1.bf16.msra.mxu0 %v341
    %468 = vmatprep.subr.bf16.mxu0 0
    %469 = vmatpush1.bf16.msra.mxu0 %v342
    %470 = vmatprep.subr.bf16.mxu0 0
    %471 = vmatpush1.bf16.msra.mxu0 %v343
    %472 = vmatprep.subr.bf16.mxu0 0
    %473 = vmatpush1.bf16.msra.mxu0 %v344
    %474 = vmatprep.mubr.bf16.mxu0 %v156
    %475 = vmatmul.mubr.bf16.gmra.mrb[0].mxu0 %v155
    %v476 = vpop.f32.mrb[0].mxu0
    %v477 = vadd.f32 %v412, %v476
    %v478 = vpop.f32.mrb[0].mxu0
    %v479 = vpop.f32.mrb[0].mxu0
    %v480 = vadd.f32 %v415, %v479
    %v481 = vpop.f32.mrb[0].mxu0
    %482 = vmatprep.mubr.bf16.mxu0 %v160
    %483 = vmatmul.mubr.bf16.gmra.mrb[0].mxu0 %v159
    %v484 = vpop.f32.mrb[0].mxu0
    %v485 = vadd.f32 %v420, %v484
    %v486 = vpop.f32.mrb[0].mxu0
    %v487 = vpop.f32.mrb[0].mxu0
    %v488 = vadd.f32 %v423, %v487
    %v489 = vpop.f32.mrb[0].mxu0
    %490 = vmatprep.mubr.bf16.mxu0 %v164
    %491 = vmatmul.mubr.bf16.gmra.mrb[0].mxu0 %v163
    %v492 = vpop.f32.mrb[0].mxu0
    %v493 = vadd.f32 %v428, %v492
    %v494 = vpop.f32.mrb[0].mxu0
    %v495 = vpop.f32.mrb[0].mxu0
    %v496 = vadd.f32 %v431, %v495
    %v497 = vpop.f32.mrb[0].mxu0
    %498 = vmatprep.mubr.bf16.mxu0 %v168
    %499 = vmatmul.mubr.bf16.gmra.mrb[0].mxu0 %v167
    %v500 = vpop.f32.mrb[0].mxu0
    %v501 = vadd.f32 %v436, %v500
    %v502 = vpop.f32.mrb[0].mxu0
    %v503 = vpop.f32.mrb[0].mxu0
    %v504 = vadd.f32 %v439, %v503
    %v505 = vpop.f32.mrb[0].mxu0
    %506 = vdwg.mxu0
    %vm507 = vcmask 261120
    %v508 = vsel %vm507, %v477, 0.0
    %509 = vadd.xlane.f32.xlu0 %v508
    %v510 = vpop.xlane.xlu0 %509
    %v511 = vsel %vm507, %v480, 0.0
    %512 = vadd.xlane.f32.xlu0 %v511
    %v513 = vpop.xlane.xlu0 %512
    %v514 = vsel %vm507, %v485, 0.0
    %515 = vadd.xlane.f32.xlu0 %v514
    %v516 = vpop.xlane.xlu0 %515
    %v517 = vsel %vm507, %v488, 0.0
    %518 = vadd.xlane.f32.xlu0 %v517
    %v519 = vpop.xlane.xlu0 %518
    %v520 = vsel %vm507, %v493, 0.0
    %521 = vadd.xlane.f32.xlu0 %v520
    %v522 = vpop.xlane.xlu0 %521
    %v523 = vsel %vm507, %v496, 0.0
    %524 = vadd.xlane.f32.xlu0 %v523
    %v525 = vpop.xlane.xlu0 %524
    %v526 = vsel %vm507, %v501, 0.0
    %527 = vadd.xlane.f32.xlu0 %v526
    %v528 = vpop.xlane.xlu0 %527
    %v529 = vsel %vm507, %v504, 0.0
    %530 = vadd.xlane.f32.xlu0 %v529
    %v531 = vpop.xlane.xlu0 %530
    %v532 = vmul.f32 %v510, 0.03125
    %v533 = vmul.f32 %v513, 0.03125
    %v534 = vmul.f32 %v516, 0.03125
    %v535 = vmul.f32 %v519, 0.03125
    %v536 = vmul.f32 %v522, 0.03125
    %v537 = vmul.f32 %v525, 0.03125
    %v538 = vmul.f32 %v528, 0.03125
    %v539 = vmul.f32 %v531, 0.03125
    %v540 = vsub.f32 %v477, %v532
    %v541 = vsub.f32 %v480, %v533
    %v542 = vsub.f32 %v485, %v534
    %v543 = vsub.f32 %v488, %v535
    %v544 = vsub.f32 %v493, %v536
    %v545 = vsub.f32 %v496, %v537
    %v546 = vsub.f32 %v501, %v538
    %v547 = vsub.f32 %v504, %v539
    %v548 = vmul.f32 %v540, %v540
    %v549 = vmul.f32 %v541, %v541
    %v550 = vmul.f32 %v542, %v542
    %v551 = vmul.f32 %v543, %v543
    %v552 = vmul.f32 %v544, %v544
    %v553 = vmul.f32 %v545, %v545
    %v554 = vmul.f32 %v546, %v546
    %v555 = vmul.f32 %v547, %v547
    %v556 = vsel %vm507, %v548, 0.0
    %557 = vadd.xlane.f32.xlu0 %v556
    %v558 = vpop.xlane.xlu0 %557
    %v559 = vsel %vm507, %v549, 0.0
    %560 = vadd.xlane.f32.xlu0 %v559
    %v561 = vpop.xlane.xlu0 %560
    %v562 = vsel %vm507, %v550, 0.0
    %563 = vadd.xlane.f32.xlu0 %v562
    %v564 = vpop.xlane.xlu0 %563
    %v565 = vsel %vm507, %v551, 0.0
    %566 = vadd.xlane.f32.xlu0 %v565
    %v567 = vpop.xlane.xlu0 %566
    %v568 = vsel %vm507, %v552, 0.0
    %569 = vadd.xlane.f32.xlu0 %v568
    %v570 = vpop.xlane.xlu0 %569
    %v571 = vsel %vm507, %v553, 0.0
    %572 = vadd.xlane.f32.xlu0 %v571
    %v573 = vpop.xlane.xlu0 %572
    %v574 = vsel %vm507, %v554, 0.0
    %575 = vadd.xlane.f32.xlu0 %v574
    %v576 = vpop.xlane.xlu0 %575
    %v577 = vsel %vm507, %v555, 0.0
    %578 = vadd.xlane.f32.xlu0 %v577
    %v579 = vpop.xlane.xlu0 %578
    %v580 = vmul.f32 %v558, 0.03125
    %v581 = vmul.f32 %v561, 0.03125
    %v582 = vmul.f32 %v564, 0.03125
    %v583 = vmul.f32 %v567, 0.03125
    %v584 = vmul.f32 %v570, 0.03125
    %v585 = vmul.f32 %v573, 0.03125
    %v586 = vmul.f32 %v576, 0.03125
    %v587 = vmul.f32 %v579, 0.03125
    %v588 = vld [vmem:[%s2] sm:$0xff]
    %v589 = vld [vmem:[%s2 + $0x8] sm:$0xff]
    %v590 = vld [vmem:[%s2 + $0x10] sm:$0xff]
    %v591 = vld [vmem:[%s2 + $0x18] sm:$0xff]
    %v592 = vld [vmem:[%s2 + $0x20] sm:$0xff]
    %v593 = vld [vmem:[%s2 + $0x28] sm:$0xff]
    %v594 = vld [vmem:[%s2 + $0x30] sm:$0xff]
    %v595 = vld [vmem:[%s2 + $0x38] sm:$0xff]
    %v596 = vadd.f32 %v580, 1e-05
    %v597 = vadd.f32 %v581, 1e-05
    %v598 = vadd.f32 %v582, 1e-05
    %v599 = vadd.f32 %v583, 1e-05
    %v600 = vadd.f32 %v584, 1e-05
    %v601 = vadd.f32 %v585, 1e-05
    %v602 = vadd.f32 %v586, 1e-05
    %v603 = vadd.f32 %v587, 1e-05
    %v604 = vrsqrt.pop %v596
    %v605 = vrsqrt.pop %v597
    %v606 = vrsqrt.pop %v598
    %v607 = vrsqrt.pop %v599
    %v608 = vrsqrt.pop %v600
    %v609 = vrsqrt.pop %v601
    %v610 = vrsqrt.pop %v602
    %v611 = vrsqrt.pop %v603
    %v612 = vmul.f32 %v588, %v604
    %v613 = vmul.f32 %v589, %v605
    %v614 = vmul.f32 %v590, %v606
    %v615 = vmul.f32 %v591, %v607
    %v616 = vmul.f32 %v592, %v608
    %v617 = vmul.f32 %v593, %v609
    %v618 = vmul.f32 %v594, %v610
    %v619 = vmul.f32 %v595, %v611
    %621 = vset.pattern.permute.xlu0 0
    %622 = vperm.xlu0 %621, %v612
    %v623 = vpop.permute.xlu0 %622
    %626 = vset.pattern.permute.xlu0 0
    %627 = vperm.xlu0 %626, %v613
    %v628 = vpop.permute.xlu0 %627
    %631 = vset.pattern.permute.xlu0 0
    %632 = vperm.xlu0 %631, %v614
    %v633 = vpop.permute.xlu0 %632
    %636 = vset.pattern.permute.xlu0 0
    %637 = vperm.xlu0 %636, %v615
    %v638 = vpop.permute.xlu0 %637
    %641 = vset.pattern.permute.xlu0 0
    %642 = vperm.xlu0 %641, %v616
    %v643 = vpop.permute.xlu0 %642
    %646 = vset.pattern.permute.xlu0 0
    %647 = vperm.xlu0 %646, %v617
    %v648 = vpop.permute.xlu0 %647
    %651 = vset.pattern.permute.xlu0 0
    %652 = vperm.xlu0 %651, %v618
    %v653 = vpop.permute.xlu0 %652
    %656 = vset.pattern.permute.xlu0 0
    %657 = vperm.xlu0 %656, %v619
    %v658 = vpop.permute.xlu0 %657
    %v660 = vmul.f32 %v540, %v623
    %v661 = vmul.f32 %v541, %v628
    %v662 = vmul.f32 %v542, %v633
    %v663 = vmul.f32 %v543, %v638
    %v664 = vmul.f32 %v544, %v643
    %v665 = vmul.f32 %v545, %v648
    %v666 = vmul.f32 %v546, %v653
    %v667 = vmul.f32 %v547, %v658
    %v668 = vld [vmem:[%s3] sm:$0xff]
    %v669 = vld [vmem:[%s3 + $0x8] sm:$0xff]
    %v670 = vld [vmem:[%s3 + $0x10] sm:$0xff]
    %v671 = vld [vmem:[%s3 + $0x18] sm:$0xff]
    %v672 = vld [vmem:[%s3 + $0x20] sm:$0xff]
    %v673 = vld [vmem:[%s3 + $0x28] sm:$0xff]
    %v674 = vld [vmem:[%s3 + $0x30] sm:$0xff]
    %v675 = vld [vmem:[%s3 + $0x38] sm:$0xff]
    %677 = vset.pattern.permute.xlu0 0
    %678 = vperm.xlu0 %677, %v668
    %v679 = vpop.permute.xlu0 %678
    %682 = vset.pattern.permute.xlu0 0
    %683 = vperm.xlu0 %682, %v669
    %v684 = vpop.permute.xlu0 %683
    %687 = vset.pattern.permute.xlu0 0
    %688 = vperm.xlu0 %687, %v670
    %v689 = vpop.permute.xlu0 %688
    %692 = vset.pattern.permute.xlu0 0
    %693 = vperm.xlu0 %692, %v671
    %v694 = vpop.permute.xlu0 %693
    %697 = vset.pattern.permute.xlu0 0
    %698 = vperm.xlu0 %697, %v672
    %v699 = vpop.permute.xlu0 %698
    %702 = vset.pattern.permute.xlu0 0
    %703 = vperm.xlu0 %702, %v673
    %v704 = vpop.permute.xlu0 %703
    %707 = vset.pattern.permute.xlu0 0
    %708 = vperm.xlu0 %707, %v674
    %v709 = vpop.permute.xlu0 %708
    %712 = vset.pattern.permute.xlu0 0
    %713 = vperm.xlu0 %712, %v675
    %v714 = vpop.permute.xlu0 %713
    %v716 = vadd.f32 %v660, %v679
    %v717 = vadd.f32 %v661, %v684
    %v718 = vadd.f32 %v662, %v689
    %v719 = vadd.f32 %v663, %v694
    %v720 = vadd.f32 %v664, %v699
    %v721 = vadd.f32 %v665, %v704
    %v722 = vadd.f32 %v666, %v709
    %v723 = vadd.f32 %v667, %v714
    %v724 = vmul.f32 %v716, 0.2
    %v725 = vmul.f32 %v717, 0.2
    %v726 = vmul.f32 %v718, 0.2
    %v727 = vmul.f32 %v719, 0.2
    %v728 = vmul.f32 %v720, 0.2
    %v729 = vmul.f32 %v721, 0.2
    %v730 = vmul.f32 %v722, 0.2
    %v731 = vmul.f32 %v723, 0.2
    %v732 = vmax.f32 %v716, %v724
    %v733 = vmax.f32 %v717, %v725
    %v734 = vmax.f32 %v718, %v726
    %v735 = vmax.f32 %v719, %v727
    %v736 = vmax.f32 %v720, %v728
    %v737 = vmax.f32 %v721, %v729
    %v738 = vmax.f32 %v722, %v730
    %v739 = vmax.f32 %v723, %v731
    %v740 = vld [vmem:[%s4] sm:$0xff]
    %v741 = vld [vmem:[%s4 + $0x8] sm:$0xff]
    %v742 = vld [vmem:[%s4 + $0x10] sm:$0xff]
    %v743 = vld [vmem:[%s4 + $0x18] sm:$0xff]
    %v744 = vld [vmem:[%s4 + $0x20] sm:$0xff]
    %v745 = vld [vmem:[%s4 + $0x28] sm:$0xff]
    %v746 = vld [vmem:[%s4 + $0x30] sm:$0xff]
    %v747 = vld [vmem:[%s4 + $0x38] sm:$0xff]
    %v748 = vmul.f32 %v732, %v740
    %v749 = vmul.f32 %v733, %v741
    %v750 = vmul.f32 %v734, %v742
    %v751 = vmul.f32 %v735, %v743
    %v752 = vmul.f32 %v736, %v744
    %v753 = vmul.f32 %v737, %v745
    %v754 = vmul.f32 %v738, %v746
    %v755 = vmul.f32 %v739, %v747
    %v756 = vsel %vm507, %v748, 0.0
    %v757 = vsel %vm507, %v749, 0.0
    %v758 = vadd.f32 %v756, %v757
    %v759 = vsel %vm507, %v750, 0.0
    %v760 = vadd.f32 %v758, %v759
    %v761 = vsel %vm507, %v751, 0.0
    %v762 = vadd.f32 %v760, %v761
    %v763 = vsel %vm507, %v752, 0.0
    %v764 = vadd.f32 %v762, %v763
    %v765 = vsel %vm507, %v753, 0.0
    %v766 = vadd.f32 %v764, %v765
    %v767 = vsel %vm507, %v754, 0.0
    %v768 = vadd.f32 %v766, %v767
    %v769 = vsel %vm507, %v755, 0.0
    %v770 = vadd.f32 %v768, %v769
    %v771 = vrot.slane %v770, 4
    %v772 = vadd.f32 %v770, %v771
    %v773 = vrot.slane %v772, 2
    %v774 = vadd.f32 %v772, %v773
    %v775 = vrot.slane %v774, 1
    %v776 = vadd.f32 %v774, %v775
    %v777 = vld [vmem:[%s5] sm:$0xff]
    %v778 = vld [vmem:[%s5 + $0x8] sm:$0xff]
    %v779 = vld [vmem:[%s5 + $0x10] sm:$0xff]
    %v780 = vld [vmem:[%s5 + $0x18] sm:$0xff]
    %v782 = vsel %vm507, %v776, 0
    %784 = vmatprep.subr.mxu0 0.0
    %785 = vmatpush1.msra.mxu0 %v777
    %786 = vmatprep.subr.mxu0 0.0
    %787 = vmatpush1.msra.mxu0 %v778
    %788 = vmatprep.subr.mxu0 0.0
    %789 = vmatpush1.msra.mxu0 %v779
    %790 = vmatprep.subr.mxu0 0.0
    %791 = vmatpush1.msra.mxu0 %v780
    %792 = vmatprep.subr.mxu0 0.0
    %793 = vmatpush1.msra.mxu0 0.0
    %794 = vmatprep.subr.mxu0 0.0
    %795 = vmatpush1.msra.mxu0 0.0
    %796 = vmatprep.subr.mxu0 0.0
    %797 = vmatpush1.msra.mxu0 0.0
    %798 = vmatprep.subr.mxu0 0.0
    %799 = vmatpush1.msra.mxu0 0.0
    %800 = vmatprep.subr.mxu0 0.0
    %801 = vmatpush1.msra.mxu0 0.0
    %802 = vmatprep.subr.mxu0 0.0
    %803 = vmatpush1.msra.mxu0 0.0
    %804 = vmatprep.subr.mxu0 0.0
    %805 = vmatpush1.msra.mxu0 0.0
    %806 = vmatprep.subr.mxu0 0.0
    %807 = vmatpush1.msra.mxu0 0.0
    %808 = vmatprep.subr.mxu0 0.0
    %809 = vmatpush1.msra.mxu0 0.0
    %810 = vmatprep.subr.mxu0 0.0
    %811 = vmatpush1.msra.mxu0 0.0
    %812 = vmatprep.subr.mxu0 0.0
    %813 = vmatpush1.msra.mxu0 0.0
    %814 = vmatprep.subr.mxu0 0.0
    %815 = vmatpush1.msra.mxu0 0.0
    %816 = vmatprep.subr.mxu0 0.0
    %817 = vmatpush1.msra.mxu0 0.0
    %818 = vmatprep.subr.mxu0 0.0
    %819 = vmatpush1.msra.mxu0 0.0
    %820 = vmatprep.subr.mxu0 0.0
    %821 = vmatpush1.msra.mxu0 0.0
    %822 = vmatprep.subr.mxu0 0.0
    %823 = vmatpush1.msra.mxu0 0.0
    %824 = vmatprep.subr.mxu0 0.0
    %825 = vmatpush1.msra.mxu0 0.0
    %826 = vmatprep.subr.mxu0 0.0
    %827 = vmatpush1.msra.mxu0 0.0
    %828 = vmatprep.subr.mxu0 0.0
    %829 = vmatpush1.msra.mxu0 0.0
    %830 = vmatprep.subr.mxu0 0.0
    %831 = vmatpush1.msra.mxu0 0.0
    %832 = vmatprep.subr.mxu0 0.0
    %833 = vmatpush1.msra.mxu0 0.0
    %834 = vmatprep.subr.mxu0 0.0
    %835 = vmatpush1.msra.mxu0 0.0
    %836 = vmatprep.subr.mxu0 0.0
    %837 = vmatpush1.msra.mxu0 0.0
    %838 = vmatprep.subr.mxu0 0.0
    %839 = vmatpush1.msra.mxu0 0.0
    %840 = vmatprep.subr.mxu0 0.0
    %841 = vmatpush1.msra.mxu0 0.0
    %842 = vmatprep.subr.mxu0 0.0
    %843 = vmatpush1.msra.mxu0 0.0
    %844 = vmatprep.subr.mxu0 0.0
    %845 = vmatpush1.msra.mxu0 0.0
    %846 = vmatprep.subr.mxu0 0.0
    %847 = vmatpush1.msra.mxu0 0.0
    %848 = vmatprep.mubr.f32.mxu0 0.0
    %849 = vmatmul.mubr.f32.gmra.mrb[0].mxu0 %v782
    %v850 = vpop.f32.mrb[0].mxu0
    %v851 = vadd.f32 0.0, %v850
    %v852 = vpop.f32.mrb[0].mxu0
    %853 = vdwg.mxu0
    %v854 = vxor.u32 %v851, 2147483648
    %v855 = vmul.f32 %v854, 1.442695
    %v856 = vpow.pop %v855
    %v857 = vadd.f32 %v856, 1.0
    %v858 = vrcp.pop %v857
    %v859 = vmul.f32 1.0, %v858
    %vm860 = vcmask 8192
    %861 = vst.msk [vmem:[#allocation2] sm:$0x1] %vm860, %v859
    // Predicated region
    $region26: #{discriminator_forward.7} parent=1 // pred_check
      _
    $region27: #{discriminator_forward.7} parent=1 // pred_check_branch
      %863 = sbr.rel (0) target = $region29
    $region28: #{discriminator_forward.7} parent=1 // pred_region
      %s865 = ssub.s32 16, 16
      %866 = vsyncadd [#allocation3], %s865
      %s868 = sshll.u32 [#allocation2], 4
      %s869 = int_to_ptr.vmem [resolvable:$true] %s868
      %871 = dma.vmem_to_hbm [thread:$0]  %s869, 16, %s6, [#allocation3]
    $region29: #{discriminator_forward.7} parent=1 // pred_fallthru
      _
    // Predicated region
    $region30: #{discriminator_forward.7} parent=1 // pred_check
      _
    $region31: #{discriminator_forward.7} parent=1 // pred_check_branch
      %873 = sbr.rel (0) target = $region33
    $region32: #{discriminator_forward.7} parent=1 // pred_region
      %874 = dma.done [#allocation3], 16
    $region33: #{discriminator_forward.7} parent=1 // pred_fallthru
      _
    %875 = vsyncpa [#allocation3], 1

</llo_original>
